<compile_context>
chip_gen: v7x
topology: tpu7x:2x2x1
jax: 0.10.0
libtpu: 0.0.40
codegen_flags: <defaults>
</compile_context>

<pallas_src>
import functools

import jax
import jax.numpy as jnp
from jax.experimental import pallas as pl
from jax.experimental.pallas import tpu as pltpu

# Synthetic primitive set (stands in for NA_PRIMITIVES).
NA_PRIMITIVES = ["gcn", "sage", "gin", "gat", "linear"]
NUM_OPS = len(NA_PRIMITIVES)


def _round_up(v, m):
    return (v + m - 1) // m * m


def _na_mixed_kernel(*refs, num_ops, f_out_pad, ops_per_slab, with_linear):
    """One (row-tile, col-tile) grid step.

    Ref order (with_linear=True):  a, xc, xr, wg, wl, b, wv, o, ax
    Ref order (with_linear=False): a, xc,     wg,     b, wv, o, ax

    a  : [t, t]      bf16  normalized-adjacency tile
    xc : [t, Fp]     bf16  x rows for this column tile (aggregation operand)
    xr : [t, Fp]     bf16  x rows for this row tile (nn.Linear operand)
    wg : [Fp, K*P]   bf16  all K graph-op weights, op-major on lanes
    wl : [Fp, K*P]   bf16  all K nn.Linear weights
    b  : [1, K*P]    f32   folded biases (B_k [+ Bl_k]), op-major
    wv : [1, K*P]    f32   arch weights w_k repeated across each op slab
    o  : [t, P]      f32   output tile (resident across the col axis)
    ax : [t, Fp]     f32   scratch accumulator for A @ X
    """
    if with_linear:
        a_ref, xc_ref, xr_ref, wg_ref, wl_ref, b_ref, wv_ref, o_ref, ax_ref = refs
    else:
        a_ref, xc_ref, wg_ref, b_ref, wv_ref, o_ref, ax_ref = refs

    c = pl.program_id(1)

    @pl.when(c == 0)
    def _init():
        ax_ref[...] = jnp.zeros_like(ax_ref)

    # Accumulate the aggregation A @ X over column tiles (bf16 MXU, f32 acc).
    # Full-lane (Fp multiple of 128) -> unmasked stores.
    ax_ref[...] += jnp.dot(a_ref[...], xc_ref[...],
                           preferred_element_type=jnp.float32)

    @pl.when(c == pl.num_programs(1) - 1)
    def _finalize():
        ax = ax_ref[...].astype(jnp.bfloat16)
        xr = xr_ref[...] if with_linear else None
        acc = jnp.zeros(o_ref.shape, jnp.float32)
        # Chunk the epilogue over slabs of `ops_per_slab` primitives so the
        # live f32 intermediates stay within the vreg file instead of
        # spilling, and the exp of slab s overlaps the matmul of slab s+1.
        for s0 in range(0, num_ops, ops_per_slab):
            s1 = min(s0 + ops_per_slab, num_ops)
            lo, hi = s0 * f_out_pad, s1 * f_out_pad
            h = jnp.dot(ax, wg_ref[:, lo:hi],
                        preferred_element_type=jnp.float32)
            if with_linear:
                h = h + jnp.dot(xr, wl_ref[:, lo:hi],
                                preferred_element_type=jnp.float32)
            h = h + b_ref[:, lo:hi]
            # ELU (alpha=1); exp(min(h,0)) keeps large positives overflow-safe.
            act = jnp.where(h > 0.0, h, jnp.exp(jnp.minimum(h, 0.0)) - 1.0)
            act = act * wv_ref[:, lo:hi]            # arch-weight each op slab
            for k in range(s1 - s0):                # static, lane-aligned sum
                acc = acc + act[:, k * f_out_pad:(k + 1) * f_out_pad]
        o_ref[...] = acc


def na_mixed_op(x, weights, adj, W, B, Wl=None, Bl=None, *, with_linear=True,
                ops_per_slab=2):
    """Pallas forward of NaMixedOp.

    x: [N, F_in] f32, weights: [K] f32, adj: [N, N] f32 (GCN-normalized),
    W/Wl: [K, F_in, F_out], B/Bl: [K, F_out].  Returns [N, F_out] f32.
    `ops_per_slab`: primitives per epilogue chunk (2 -> 256 lanes; use 1 on
    v5e if the epilogue shows vreg pressure).
    """
    N, F_in = x.shape
    K, _, F_out = W.shape
    f_out_pad = _round_up(F_out, 128)     # lane-dense per-op output slab
    f_in_pad = _round_up(F_in, 128)       # full-lane x / ax tiles

    # Tile size: 1024 where N allows (mem-bound A stream, fewer grid steps).
    # If a single row tile would cover the graph, split it so both v7x
    # TensorCores get a "parallel" row tile (negligible cost on v5e/v6e).
    t = min(1024, _round_up(N, 128))
    if _round_up(N, t) // t < 2 and t >= 256:
        t = _round_up(t // 2, 128)
    n_pad = _round_up(N, t)
    pad_n = n_pad - N

    # --- pack operands (wrapper-side, plain JAX glue) ---
    a_p = jnp.pad(adj, ((0, pad_n), (0, pad_n))).astype(jnp.bfloat16)
    x_p = jnp.pad(x, ((0, pad_n), (0, f_in_pad - F_in))).astype(jnp.bfloat16)

    if with_linear:
        if Wl is None or Bl is None:
            raise ValueError("with_linear=True requires Wl and Bl")
        b_cat = B + Bl
    else:
        b_cat = B

    def pack_w(w3):  # [K, F_in, F_out] -> [f_in_pad, K * f_out_pad]
        w3 = jnp.pad(w3, ((0, 0), (0, f_in_pad - F_in), (0, f_out_pad - F_out)))
        return jnp.transpose(w3, (1, 0, 2)).reshape(f_in_pad, K * f_out_pad)

    wg_big = pack_w(W).astype(jnp.bfloat16)
    b_big = jnp.pad(b_cat, ((0, 0), (0, f_out_pad - F_out))
                    ).reshape(1, K * f_out_pad).astype(jnp.float32)
    wv_big = jnp.repeat(weights.astype(jnp.float32), f_out_pad
                        ).reshape(1, K * f_out_pad)

    kp = K * f_out_pad
    grid = (n_pad // t, n_pad // t)

    # Inputs / specs built conditionally: with_linear=False streams neither a
    # zero Wl nor a duplicate x row tile.
    in_specs = [
        pl.BlockSpec((t, t), lambda r, c: (r, c)),             # adjacency
        pl.BlockSpec((t, f_in_pad), lambda r, c: (c, 0)),      # x (col tile)
    ]
    operands = [a_p, x_p]
    if with_linear:
        wl_big = pack_w(Wl).astype(jnp.bfloat16)
        in_specs += [
            pl.BlockSpec((t, f_in_pad), lambda r, c: (r, 0)),  # x (row tile)
            pl.BlockSpec((f_in_pad, kp), lambda r, c: (0, 0)), # graph weights
            pl.BlockSpec((f_in_pad, kp), lambda r, c: (0, 0)), # linear weights
        ]
        operands += [x_p, wg_big, wl_big]
    else:
        in_specs += [pl.BlockSpec((f_in_pad, kp), lambda r, c: (0, 0))]
        operands += [wg_big]
    in_specs += [
        pl.BlockSpec((1, kp), lambda r, c: (0, 0)),            # folded biases
        pl.BlockSpec((1, kp), lambda r, c: (0, 0)),            # arch weights
    ]
    operands += [b_big, wv_big]

    # VMEM budget: actual double-buffered footprint + headroom for Mosaic
    # internal scratch (keeps well under v7x's 64 MiB physical VMEM).
    footprint = (
        2 * t * t * 2                                   # A tile x2 buffers
        + 2 * t * f_in_pad * 2                          # xc tile
        + (2 * t * f_in_pad * 2 if with_linear else 0)  # xr tile
        + 2 * f_in_pad * kp * 2                         # wg
        + (2 * f_in_pad * kp * 2 if with_linear else 0) # wl
        + 2 * 2 * 8 * kp * 4                            # b + wv (sublane pad)
        + 2 * t * f_out_pad * 4                         # output tile
        + t * f_in_pad * 4                              # ax scratch
    )
    vmem_limit = int(footprint + 12 * 1024 * 1024)

    kernel = functools.partial(
        _na_mixed_kernel, num_ops=K, f_out_pad=f_out_pad,
        ops_per_slab=ops_per_slab, with_linear=with_linear)

    out_pad = pl.pallas_call(
        kernel,
        out_shape=jax.ShapeDtypeStruct((n_pad, f_out_pad), jnp.float32),
        grid_spec=pltpu.PrefetchScalarGridSpec(
            num_scalar_prefetch=0,
            grid=grid,
            in_specs=in_specs,
            out_specs=pl.BlockSpec((t, f_out_pad), lambda r, c: (r, 0)),
            scratch_shapes=[pltpu.VMEM((t, f_in_pad), jnp.float32)],
        ),
        compiler_params=pltpu.CompilerParams(
            dimension_semantics=("parallel", "arbitrary"),
            vmem_limit_bytes=vmem_limit,
        ),
    )(*operands)

    # Padded rows/lanes contain elu(bias)*w garbage — never expose them.
    if n_pad == N and f_out_pad == F_out:
        return out_pad
    return out_pad[:N, :F_out]


def build_norm_adj(edge_index, n):
    """GCN-normalized dense adjacency with self loops (plain-JAX glue)."""
    # TODO(synk): for large sparse graphs, keep neighbor lists in HBM and
    # gather via manual DMA instead of densifying A.
    src, dst = edge_index[0], edge_index[1]
    a = jnp.zeros((n, n), jnp.float32).at[dst, src].set(1.0)
    a = jnp.maximum(a, a.T)            # symmetrize
    a = a + jnp.eye(n, dtype=jnp.float32)
    deg = a.sum(axis=1)
    dinv = 1.0 / jnp.sqrt(deg)
    return a * dinv[:, None] * dinv[None, :]


def reference(x, weights, adj, W, B, Wl=None, Bl=None, with_linear=True):
    """Pure-JAX f32 reference (torch-parity ELU via expm1)."""
    ax = adj @ x
    out = jnp.zeros((x.shape[0], W.shape[-1]), jnp.float32)
    for k in range(W.shape[0]):
        h = ax @ W[k] + B[k]
        if with_linear:
            h = h + x @ Wl[k] + Bl[k]
        out = out + weights[k] * jnp.where(h > 0.0, h, jnp.expm1(h))
    return out


if __name__ == "__main__":
    # Small graph: N nodes, node features in_dim -> out_dim.
    N, in_dim, out_dim = 16, 32, 32

    key = jax.random.PRNGKey(0)
    k_x, k_w, k_W, k_B, k_Wl, k_Bl = jax.random.split(key, 6)

    x = jax.random.normal(k_x, (N, in_dim), jnp.float32)

    # Ring graph + chords, shape [2, E]
    src = jnp.concatenate([jnp.arange(N), jnp.arange(N)])
    dst = jnp.concatenate([(jnp.arange(N) + 1) % N, (jnp.arange(N) + 5) % N])
    edge_index = jnp.stack([src, dst], axis=0)
    adj = build_norm_adj(edge_index, N)

    # Architecture mixing weights (softmax-normalized, DARTS-style).
    arch_w = jax.nn.softmax(jax.random.normal(k_w, (NUM_OPS,), jnp.float32))

    # Deterministic per-primitive parameters.
    W = 0.1 * jax.random.normal(k_W, (NUM_OPS, in_dim, out_dim), jnp.float32)
    B = 0.1 * jax.random.normal(k_B, (NUM_OPS, out_dim), jnp.float32)
    Wl = 0.1 * jax.random.normal(k_Wl, (NUM_OPS, in_dim, out_dim), jnp.float32)
    Bl = 0.1 * jax.random.normal(k_Bl, (NUM_OPS, out_dim), jnp.float32)

    # with_linear=True path
    out = na_mixed_op(x, arch_w, adj, W, B, Wl, Bl, with_linear=True)
    out = jax.block_until_ready(out)
    ref = reference(x, arch_w, adj, W, B, Wl, Bl, with_linear=True)
    assert out.shape == (N, out_dim)
    # bf16 MXU operands vs f32 reference -> loosened tolerance.
    assert jnp.allclose(out, ref, atol=2e-2, rtol=2e-2), \
        "mismatch vs JAX reference (with_linear=True)"

    # with_linear=False path (no Wl stream, no duplicate x tile)
    out2 = na_mixed_op(x, arch_w, adj, W, B, with_linear=False)
    out2 = jax.block_until_ready(out2)
    ref2 = reference(x, arch_w, adj, W, B, with_linear=False)
    assert out2.shape == (N, out_dim)
    assert jnp.allclose(out2, ref2, atol=2e-2, rtol=2e-2), \
        "mismatch vs JAX reference (with_linear=False)"

    print("KERNEL_OK")
</pallas_src>

<mosaic_0001>
module attributes {stable_mosaic.version = 11 : i64} {
  func.func @_na_mixed_kernel(%arg0: i32, %arg1: i32, %arg2: memref<128x128xbf16, #tpu.memory_space<vmem>>, %arg3: memref<128x128xbf16, #tpu.memory_space<vmem>>, %arg4: memref<128x128xbf16, #tpu.memory_space<vmem>>, %arg5: memref<128x640xbf16, #tpu.memory_space<vmem>>, %arg6: memref<128x640xbf16, #tpu.memory_space<vmem>>, %arg7: memref<1x640xf32, #tpu.memory_space<vmem>>, %arg8: memref<1x640xf32, #tpu.memory_space<vmem>>, %arg9: memref<128x128xf32, #tpu.memory_space<vmem>>, %arg10: memref<128x128xf32, #tpu.memory_space<vmem>>) attributes {dimension_semantics = [#tpu.dimension_semantics<parallel>, #tpu.dimension_semantics<arbitrary>], iteration_bounds = array<i64: 1, 1>, scalar_prefetch = 0 : i64, scratch_operands = 1 : i64, tpu.core_type = #tpu.core_type<tc>, window_params = [{transform_indices = @transform_0, window_bounds = array<i64: 128, 128>}, {transform_indices = @transform_1, window_bounds = array<i64: 128, 128>}, {transform_indices = @transform_2, window_bounds = array<i64: 128, 128>}, {pipeline_mode = #tpu.pipeline_mode<synchronous>, transform_indices = @transform_3, window_bounds = array<i64: 128, 640>}, {pipeline_mode = #tpu.pipeline_mode<synchronous>, transform_indices = @transform_4, window_bounds = array<i64: 128, 640>}, {pipeline_mode = #tpu.pipeline_mode<synchronous>, transform_indices = @transform_5, window_bounds = array<i64: 1, 640>}, {pipeline_mode = #tpu.pipeline_mode<synchronous>, transform_indices = @transform_6, window_bounds = array<i64: 1, 640>}, {transform_indices = @transform_7, window_bounds = array<i64: 128, 128>}]} {
    %c0_i32 = arith.constant 0 : i32
    %0 = arith.cmpi eq, %arg1, %c0_i32 : i32
    %1 = arith.extui %0 : i1 to i32
    %c0_i32_0 = arith.constant 0 : i32
    %2 = arith.cmpi ne, %1, %c0_i32_0 : i32
    scf.if %2 {
      %cst_10 = arith.constant 0.000000e+00 : f32
      %12 = vector.broadcast %cst_10 : f32 to vector<128x128xf32>
      %c0_11 = arith.constant 0 : index
      %c0_12 = arith.constant 0 : index
      %13 = vector.load %arg10[%c0_11, %c0_12] : memref<128x128xf32, #tpu.memory_space<vmem>>, vector<128x128xf32>
      tpu.vector_store %arg10[%c0_11, %c0_12], %12 {strides = array<i32>} : memref<128x128xf32, #tpu.memory_space<vmem>>, vector<128x128xf32>,
    } else {
    }
    %c0 = arith.constant 0 : index
    %c0_1 = arith.constant 0 : index
    %3 = vector.load %arg10[%c0, %c0_1] : memref<128x128xf32, #tpu.memory_space<vmem>>, vector<128x128xf32>
    %c0_2 = arith.constant 0 : index
    %c0_3 = arith.constant 0 : index
    %4 = vector.load %arg2[%c0_2, %c0_3] : memref<128x128xbf16, #tpu.memory_space<vmem>>, vector<128x128xbf16>
    %c0_4 = arith.constant 0 : index
    %c0_5 = arith.constant 0 : index
    %5 = vector.load %arg3[%c0_4, %c0_5] : memref<128x128xbf16, #tpu.memory_space<vmem>>, vector<128x128xbf16>
    %cst = arith.constant dense<0.000000e+00> : vector<128x128xf32>
    %6 = tpu.matmul %4, %5, %cst {dimension_numbers = #tpu.dot_dimension_numbers<[1], [0], [0], [1], [0, 0, 1, 1], [], []>} : vector<128x128xbf16>, vector<128x128xbf16>, vector<128x128xf32> -> vector<128x128xf32>
    %7 = arith.addf %3, %6 : vector<128x128xf32>
    %c0_6 = arith.constant 0 : index
    %c0_7 = arith.constant 0 : index
    %8 = vector.load %arg10[%c0_6, %c0_7] : memref<128x128xf32, #tpu.memory_space<vmem>>, vector<128x128xf32>
    tpu.vector_store %arg10[%c0_6, %c0_7], %7 {strides = array<i32>} : memref<128x128xf32, #tpu.memory_space<vmem>>, vector<128x128xf32>,
    %c0_i32_8 = arith.constant 0 : i32
    %9 = arith.cmpi eq, %arg1, %c0_i32_8 : i32
    %10 = arith.extui %9 : i1 to i32
    %c0_i32_9 = arith.constant 0 : i32
    %11 = arith.cmpi ne, %10, %c0_i32_9 : i32
    scf.if %11 {
      %c0_10 = arith.constant 0 : index
      %c0_11 = arith.constant 0 : index
      %12 = vector.load %arg10[%c0_10, %c0_11] : memref<128x128xf32, #tpu.memory_space<vmem>>, vector<128x128xf32>
      %13 = arith.truncf %12 : vector<128x128xf32> to vector<128x128xbf16>
      %c0_12 = arith.constant 0 : index
      %c0_13 = arith.constant 0 : index
      %14 = vector.load %arg4[%c0_12, %c0_13] : memref<128x128xbf16, #tpu.memory_space<vmem>>, vector<128x128xbf16>
      %cst_14 = arith.constant 0.000000e+00 : f32
      %15 = vector.broadcast %cst_14 : f32 to vector<128x128xf32>
      %c0_15 = arith.constant 0 : index
      %c0_16 = arith.constant 0 : index
      %16 = vector.load %arg5[%c0_15, %c0_16] : memref<128x640xbf16, #tpu.memory_space<vmem>>, vector<128x256xbf16>
      %cst_17 = arith.constant dense<0.000000e+00> : vector<128x256xf32>
      %17 = tpu.matmul %13, %16, %cst_17 {dimension_numbers = #tpu.dot_dimension_numbers<[1], [0], [0], [1], [0, 0, 1, 1], [], []>} : vector<128x128xbf16>, vector<128x256xbf16>, vector<128x256xf32> -> vector<128x256xf32>
      %c0_18 = arith.constant 0 : index
      %c0_19 = arith.constant 0 : index
      %18 = vector.load %arg6[%c0_18, %c0_19] : memref<128x640xbf16, #tpu.memory_space<vmem>>, vector<128x256xbf16>
      %cst_20 = arith.constant dense<0.000000e+00> : vector<128x256xf32>
      %19 = tpu.matmul %14, %18, %cst_20 {dimension_numbers = #tpu.dot_dimension_numbers<[1], [0], [0], [1], [0, 0, 1, 1], [], []>} : vector<128x128xbf16>, vector<128x256xbf16>, vector<128x256xf32> -> vector<128x256xf32>
      %20 = arith.addf %17, %19 : vector<128x256xf32>
      %c0_21 = arith.constant 0 : index
      %c0_22 = arith.constant 0 : index
      %21 = vector.load %arg7[%c0_21, %c0_22] : memref<1x640xf32, #tpu.memory_space<vmem>>, vector<1x256xf32>
      %22 = vector.broadcast %21 : vector<1x256xf32> to vector<128x256xf32>
      %23 = arith.addf %20, %22 : vector<128x256xf32>
      %cst_23 = arith.constant 0.000000e+00 : f32
      %24 = vector.broadcast %cst_23 : f32 to vector<128x256xf32>
      %25 = arith.cmpf ogt, %23, %24 : vector<128x256xf32>
      %cst_24 = arith.constant 0.000000e+00 : f32
      %26 = vector.broadcast %cst_24 : f32 to vector<128x256xf32>
      %27 = arith.minimumf %23, %26 : vector<128x256xf32>
      %28 = math.exp %27 : vector<128x256xf32>
      %cst_25 = arith.constant 1.000000e+00 : f32
      %29 = vector.broadcast %cst_25 : f32 to vector<128x256xf32>
      %30 = arith.subf %28, %29 : vector<128x256xf32>
      %31 = arith.select %25, %23, %30 : vector<128x256xi1>, vector<128x256xf32>
      %c0_26 = arith.constant 0 : index
      %c0_27 = arith.constant 0 : index
      %32 = vector.load %arg8[%c0_26, %c0_27] : memref<1x640xf32, #tpu.memory_space<vmem>>, vector<1x256xf32>
      %33 = vector.broadcast %32 : vector<1x256xf32> to vector<128x256xf32>
      %34 = arith.mulf %31, %33 : vector<128x256xf32>
      %35 = vector.extract_strided_slice %34 {offsets = [0, 0], sizes = [128, 128], strides = [1, 1]} : vector<128x256xf32> to vector<128x128xf32>
      %36 = arith.addf %15, %35 : vector<128x128xf32>
      %37 = vector.extract_strided_slice %34 {offsets = [0, 128], sizes = [128, 128], strides = [1, 1]} : vector<128x256xf32> to vector<128x128xf32>
      %38 = arith.addf %36, %37 : vector<128x128xf32>
      %c0_28 = arith.constant 0 : index
      %c256 = arith.constant 256 : index
      %39 = vector.load %arg5[%c0_28, %c256] : memref<128x640xbf16, #tpu.memory_space<vmem>>, vector<128x256xbf16>
      %cst_29 = arith.constant dense<0.000000e+00> : vector<128x256xf32>
      %40 = tpu.matmul %13, %39, %cst_29 {dimension_numbers = #tpu.dot_dimension_numbers<[1], [0], [0], [1], [0, 0, 1, 1], [], []>} : vector<128x128xbf16>, vector<128x256xbf16>, vector<128x256xf32> -> vector<128x256xf32>
      %c0_30 = arith.constant 0 : index
      %c256_31 = arith.constant 256 : index
      %41 = vector.load %arg6[%c0_30, %c256_31] : memref<128x640xbf16, #tpu.memory_space<vmem>>, vector<128x256xbf16>
      %cst_32 = arith.constant dense<0.000000e+00> : vector<128x256xf32>
      %42 = tpu.matmul %14, %41, %cst_32 {dimension_numbers = #tpu.dot_dimension_numbers<[1], [0], [0], [1], [0, 0, 1, 1], [], []>} : vector<128x128xbf16>, vector<128x256xbf16>, vector<128x256xf32> -> vector<128x256xf32>
      %43 = arith.addf %40, %42 : vector<128x256xf32>
      %c0_33 = arith.constant 0 : index
      %c256_34 = arith.constant 256 : index
      %44 = vector.load %arg7[%c0_33, %c256_34] : memref<1x640xf32, #tpu.memory_space<vmem>>, vector<1x256xf32>
      %45 = vector.broadcast %44 : vector<1x256xf32> to vector<128x256xf32>
      %46 = arith.addf %43, %45 : vector<128x256xf32>
      %cst_35 = arith.constant 0.000000e+00 : f32
      %47 = vector.broadcast %cst_35 : f32 to vector<128x256xf32>
      %48 = arith.cmpf ogt, %46, %47 : vector<128x256xf32>
      %cst_36 = arith.constant 0.000000e+00 : f32
      %49 = vector.broadcast %cst_36 : f32 to vector<128x256xf32>
      %50 = arith.minimumf %46, %49 : vector<128x256xf32>
      %51 = math.exp %50 : vector<128x256xf32>
      %cst_37 = arith.constant 1.000000e+00 : f32
      %52 = vector.broadcast %cst_37 : f32 to vector<128x256xf32>
      %53 = arith.subf %51, %52 : vector<128x256xf32>
      %54 = arith.select %48, %46, %53 : vector<128x256xi1>, vector<128x256xf32>
      %c0_38 = arith.constant 0 : index
      %c256_39 = arith.constant 256 : index
      %55 = vector.load %arg8[%c0_38, %c256_39] : memref<1x640xf32, #tpu.memory_space<vmem>>, vector<1x256xf32>
      %56 = vector.broadcast %55 : vector<1x256xf32> to vector<128x256xf32>
      %57 = arith.mulf %54, %56 : vector<128x256xf32>
      %58 = vector.extract_strided_slice %57 {offsets = [0, 0], sizes = [128, 128], strides = [1, 1]} : vector<128x256xf32> to vector<128x128xf32>
      %59 = arith.addf %38, %58 : vector<128x128xf32>
      %60 = vector.extract_strided_slice %57 {offsets = [0, 128], sizes = [128, 128], strides = [1, 1]} : vector<128x256xf32> to vector<128x128xf32>
      %61 = arith.addf %59, %60 : vector<128x128xf32>
      %c0_40 = arith.constant 0 : index
      %c512 = arith.constant 512 : index
      %62 = vector.load %arg5[%c0_40, %c512] : memref<128x640xbf16, #tpu.memory_space<vmem>>, vector<128x128xbf16>
      %cst_41 = arith.constant dense<0.000000e+00> : vector<128x128xf32>
      %63 = tpu.matmul %13, %62, %cst_41 {dimension_numbers = #tpu.dot_dimension_numbers<[1], [0], [0], [1], [0, 0, 1, 1], [], []>} : vector<128x128xbf16>, vector<128x128xbf16>, vector<128x128xf32> -> vector<128x128xf32>
      %c0_42 = arith.constant 0 : index
      %c512_43 = arith.constant 512 : index
      %64 = vector.load %arg6[%c0_42, %c512_43] : memref<128x640xbf16, #tpu.memory_space<vmem>>, vector<128x128xbf16>
      %cst_44 = arith.constant dense<0.000000e+00> : vector<128x128xf32>
      %65 = tpu.matmul %14, %64, %cst_44 {dimension_numbers = #tpu.dot_dimension_numbers<[1], [0], [0], [1], [0, 0, 1, 1], [], []>} : vector<128x128xbf16>, vector<128x128xbf16>, vector<128x128xf32> -> vector<128x128xf32>
      %66 = arith.addf %63, %65 : vector<128x128xf32>
      %c0_45 = arith.constant 0 : index
      %c512_46 = arith.constant 512 : index
      %67 = vector.load %arg7[%c0_45, %c512_46] : memref<1x640xf32, #tpu.memory_space<vmem>>, vector<1x128xf32>
      %68 = vector.broadcast %67 : vector<1x128xf32> to vector<128x128xf32>
      %69 = arith.addf %66, %68 : vector<128x128xf32>
      %cst_47 = arith.constant 0.000000e+00 : f32
      %70 = vector.broadcast %cst_47 : f32 to vector<128x128xf32>
      %71 = arith.cmpf ogt, %69, %70 : vector<128x128xf32>
      %cst_48 = arith.constant 0.000000e+00 : f32
      %72 = vector.broadcast %cst_48 : f32 to vector<128x128xf32>
      %73 = arith.minimumf %69, %72 : vector<128x128xf32>
      %74 = math.exp %73 : vector<128x128xf32>
      %cst_49 = arith.constant 1.000000e+00 : f32
      %75 = vector.broadcast %cst_49 : f32 to vector<128x128xf32>
      %76 = arith.subf %74, %75 : vector<128x128xf32>
      %77 = arith.select %71, %69, %76 : vector<128x128xi1>, vector<128x128xf32>
      %c0_50 = arith.constant 0 : index
      %c512_51 = arith.constant 512 : index
      %78 = vector.load %arg8[%c0_50, %c512_51] : memref<1x640xf32, #tpu.memory_space<vmem>>, vector<1x128xf32>
      %79 = vector.broadcast %78 : vector<1x128xf32> to vector<128x128xf32>
      %80 = arith.mulf %77, %79 : vector<128x128xf32>
      %81 = arith.addf %61, %80 : vector<128x128xf32>
      %c0_52 = arith.constant 0 : index
      %c0_53 = arith.constant 0 : index
      %82 = vector.load %arg9[%c0_52, %c0_53] : memref<128x128xf32, #tpu.memory_space<vmem>>, vector<128x128xf32>
      tpu.vector_store %arg9[%c0_52, %c0_53], %81 {strides = array<i32>} : memref<128x128xf32, #tpu.memory_space<vmem>>, vector<128x128xf32>,
    } else {
    }
    return
  }
  func.func @transform_0(%arg0: i32, %arg1: i32) -> (i32, i32) {
    %c0_i32 = arith.constant 0 : i32
    return %arg0, %arg1 : i32, i32
  }
  func.func @transform_1(%arg0: i32, %arg1: i32) -> (i32, i32) {
    %c0_i32 = arith.constant 0 : i32
    %c0_i32_0 = arith.constant 0 : i32
    return %arg1, %c0_i32 : i32, i32
  }
  func.func @transform_2(%arg0: i32, %arg1: i32) -> (i32, i32) {
    %c0_i32 = arith.constant 0 : i32
    %c0_i32_0 = arith.constant 0 : i32
    return %arg0, %c0_i32 : i32, i32
  }
  func.func @transform_3(%arg0: i32, %arg1: i32) -> (i32, i32) {
    %c0_i32 = arith.constant 0 : i32
    %c0_i32_0 = arith.constant 0 : i32
    %c0_i32_1 = arith.constant 0 : i32
    return %c0_i32, %c0_i32_0 : i32, i32
  }
  func.func @transform_4(%arg0: i32, %arg1: i32) -> (i32, i32) {
    %c0_i32 = arith.constant 0 : i32
    %c0_i32_0 = arith.constant 0 : i32
    %c0_i32_1 = arith.constant 0 : i32
    return %c0_i32, %c0_i32_0 : i32, i32
  }
  func.func @transform_5(%arg0: i32, %arg1: i32) -> (i32, i32) {
    %c0_i32 = arith.constant 0 : i32
    %c0_i32_0 = arith.constant 0 : i32
    %c0_i32_1 = arith.constant 0 : i32
    return %c0_i32, %c0_i32_0 : i32, i32
  }
  func.func @transform_6(%arg0: i32, %arg1: i32) -> (i32, i32) {
    %c0_i32 = arith.constant 0 : i32
    %c0_i32_0 = arith.constant 0 : i32
    %c0_i32_1 = arith.constant 0 : i32
    return %c0_i32, %c0_i32_0 : i32, i32
  }
  func.func @transform_7(%arg0: i32, %arg1: i32) -> (i32, i32) {
    %c0_i32 = arith.constant 0 : i32
    %c0_i32_0 = arith.constant 0 : i32
    return %arg0, %c0_i32 : i32, i32
  }
}

</mosaic_0001>

<llo_original>
// kernel: tpu_custom_call.1
$region0: #{tpu_custom_call.1}
  #allocation0 [shape = 'u32[]', space=smem, size = 0x4, offset = 0x4, fixed_abs, tag = 'smem constant byte address 0x4 - core index']
  #allocation1 [shape = 'u32[144,128]{1,0:T(1,128)}', space=vmem, size = 0x12000, scoped, tag = 'internal scratch']
  #allocation2 [shape = 'f32[128,128]{1,0:T(8,128)}', space=vmem, size = 0x10000, scoped, tag = 'scratch operand']
  %s0 = inlined_call_operand.hbm [shape: bf16[128,128], index: 0, kind: input, shape index: {}]
  %s1 = inlined_call_operand.hbm [shape: bf16[128,128], index: 1, kind: input, shape index: {}]
  %s2 = inlined_call_operand.hbm [shape: bf16[128,128], index: 2, kind: input, shape index: {}]
  %s3 = inlined_call_operand.hbm [shape: bf16[128,640], index: 3, kind: input, shape index: {}]
  %s4 = inlined_call_operand.hbm [shape: bf16[128,640], index: 4, kind: input, shape index: {}]
  %s5 = inlined_call_operand.vmem [shape: f32[1,640], index: 5, kind: input, shape index: {}]
  %s6 = inlined_call_operand.vmem [shape: f32[1,640], index: 6, kind: input, shape index: {}]
  %s7 = inlined_call_operand.hbm [shape: f32[128,128], index: 7, kind: output, shape index: {}]
  %s8 = sld [smem:[#allocation0]]
  $region66: #{tpu_custom_call.1} parent=0
    _
  %s10 = ssub.s32 1, %s8
  %s11 = scalar_select 0, %s10, %s8
  $region1: #{tpu_custom_call.1} parent=0
    #allocation3 [shape = 'u8[32768]{0}', space=vmem, size = 0x8000, scoped, tag = 'input window, operand 0, single buffered']
    #allocation4 [shape = 's32[1]{0}', space=sflag, size = 0x4, scoped, tag = 'scoped memory for tpu_custom_call.1']
    #allocation5 [shape = 's32[1]{0}', space=sflag, size = 0x4, scoped, tag = 'scoped memory for tpu_custom_call.1']
    #allocation6 [shape = 'u8[32768]{0}', space=vmem, size = 0x8000, scoped, tag = 'input window, operand 1, single buffered']
    #allocation7 [shape = 's32[1]{0}', space=sflag, size = 0x4, scoped, tag = 'scoped memory for tpu_custom_call.1']
    #allocation8 [shape = 'u8[32768]{0}', space=vmem, size = 0x8000, scoped, tag = 'input window, operand 2, single buffered']
    #allocation9 [shape = 'u8[163840]{0}', space=vmem, size = 0x28000, scoped, tag = 'input window, operand 3, single buffered']
    #allocation10 [shape = 's32[1]{0}', space=sflag, size = 0x4, scoped, tag = 'scoped memory for tpu_custom_call.1']
    #allocation11 [shape = 'u8[163840]{0}', space=vmem, size = 0x28000, scoped, tag = 'input window, operand 4, single buffered']
    #allocation12 [shape = 'u8[65536]{0}', space=vmem, size = 0x10000, scoped, tag = 'output window, operand 0, single buffered']
    %12 = vsyncpa [#allocation4], 0
    %13 = vsyncpa [#allocation7], 0
    %14 = vsyncpa [#allocation10], 0
    %15 = vsyncpa [#allocation5], 0
    // Predicated region
    $region2: #{tpu_custom_call.1} parent=1 // pred_check
      _
    $region3: #{tpu_custom_call.1} parent=1 // pred_check_branch
      %17 = sbr.rel (0) target = $region5
    $region4: #{tpu_custom_call.1} parent=1 // pred_region
      %s19 = ssub.s32 1024, 1024
      %20 = vsyncadd [#allocation4], %s19
      %s21 = sshll.u32 [#allocation3], 4
      %s22 = int_to_ptr.vmem [resolvable:$true] %s21
      %27 = dma.hbm_to_vmem [thread:$0]  %s0, 1024, %s22, [#allocation4], 64, 64, 4
    $region5: #{tpu_custom_call.1} parent=1 // pred_fallthru
      _
    // Predicated region
    $region6: #{tpu_custom_call.1} parent=1 // pred_check
      _
    $region7: #{tpu_custom_call.1} parent=1 // pred_check_branch
      %29 = sbr.rel (0) target = $region9
    $region8: #{tpu_custom_call.1} parent=1 // pred_region
      %s31 = ssub.s32 1024, 1024
      %32 = vsyncadd [#allocation7], %s31
      %s33 = sshll.u32 [#allocation6], 4
      %s34 = int_to_ptr.vmem [resolvable:$true] %s33
      %39 = dma.hbm_to_vmem [thread:$0]  %s1, 1024, %s34, [#allocation7], 64, 64, 4
    $region9: #{tpu_custom_call.1} parent=1 // pred_fallthru
      _
    // Predicated region
    $region10: #{tpu_custom_call.1} parent=1 // pred_check
      _
    $region11: #{tpu_custom_call.1} parent=1 // pred_check_branch
      %41 = sbr.rel (0) target = $region13
    $region12: #{tpu_custom_call.1} parent=1 // pred_region
      %s43 = ssub.s32 1024, 1024
      %44 = vsyncadd [#allocation7], %s43
      %s45 = sshll.u32 [#allocation8], 4
      %s46 = int_to_ptr.vmem [resolvable:$true] %s45
      %51 = dma.hbm_to_vmem [thread:$0]  %s2, 1024, %s46, [#allocation7], 64, 64, 4
    $region13: #{tpu_custom_call.1} parent=1 // pred_fallthru
      _
    // Predicated region
    $region14: #{tpu_custom_call.1} parent=1 // pred_check
      _
    $region15: #{tpu_custom_call.1} parent=1 // pred_check_branch
      %53 = sbr.rel (0) target = $region17
    $region16: #{tpu_custom_call.1} parent=1 // pred_region
      %s55 = ssub.s32 5120, 5120
      %56 = vsyncadd [#allocation10], %s55
      %s57 = sshll.u32 [#allocation9], 4
      %s58 = int_to_ptr.vmem [resolvable:$true] %s57
      %63 = dma.hbm_to_vmem [thread:$0]  %s3, 5120, %s58, [#allocation10], 320, 320, 20
    $region17: #{tpu_custom_call.1} parent=1 // pred_fallthru
      _
    // Predicated region
    $region18: #{tpu_custom_call.1} parent=1 // pred_check
      _
    $region19: #{tpu_custom_call.1} parent=1 // pred_check_branch
      %65 = sbr.rel (0) target = $region21
    $region20: #{tpu_custom_call.1} parent=1 // pred_region
      %s67 = ssub.s32 5120, 5120
      %68 = vsyncadd [#allocation10], %s67
      %s69 = sshll.u32 [#allocation11], 4
      %s70 = int_to_ptr.vmem [resolvable:$true] %s69
      %75 = dma.hbm_to_vmem [thread:$0]  %s4, 5120, %s70, [#allocation10], 320, 320, 20
    $region21: #{tpu_custom_call.1} parent=1 // pred_fallthru
      _
    // Predicated region
    $region22: #{tpu_custom_call.1} parent=1 // pred_check
      _
    $region23: #{tpu_custom_call.1} parent=1 // pred_check_branch
      %77 = sbr.rel (0) target = $region25
    $region24: #{tpu_custom_call.1} parent=1 // pred_region
      _
    $region25: #{tpu_custom_call.1} parent=1 // pred_fallthru
      _
    // Predicated region
    $region26: #{tpu_custom_call.1} parent=1 // pred_check
      _
    $region27: #{tpu_custom_call.1} parent=1 // pred_check_branch
      %79 = sbr.rel (0) target = $region29
    $region28: #{tpu_custom_call.1} parent=1 // pred_region
      _
    $region29: #{tpu_custom_call.1} parent=1 // pred_fallthru
      _
    // Predicated region
    $region30: #{tpu_custom_call.1} parent=1 // pred_check
      _
    $region31: #{tpu_custom_call.1} parent=1 // pred_check_branch
      %81 = sbr.rel (0) target = $region33
    $region32: #{tpu_custom_call.1} parent=1 // pred_region
      %82 = dma.done [#allocation4], 1024
    $region33: #{tpu_custom_call.1} parent=1 // pred_fallthru
      _
    // Predicated region
    $region34: #{tpu_custom_call.1} parent=1 // pred_check
      _
    $region35: #{tpu_custom_call.1} parent=1 // pred_check_branch
      %84 = sbr.rel (0) target = $region37
    $region36: #{tpu_custom_call.1} parent=1 // pred_region
      %85 = dma.done [#allocation7], 1024
    $region37: #{tpu_custom_call.1} parent=1 // pred_fallthru
      _
    // Predicated region
    $region38: #{tpu_custom_call.1} parent=1 // pred_check
      _
    $region39: #{tpu_custom_call.1} parent=1 // pred_check_branch
      %87 = sbr.rel (0) target = $region41
    $region40: #{tpu_custom_call.1} parent=1 // pred_region
      %88 = dma.done [#allocation7], 1024
    $region41: #{tpu_custom_call.1} parent=1 // pred_fallthru
      _
    // Predicated region
    $region42: #{tpu_custom_call.1} parent=1 // pred_check
      _
    $region43: #{tpu_custom_call.1} parent=1 // pred_check_branch
      %90 = sbr.rel (0) target = $region45
    $region44: #{tpu_custom_call.1} parent=1 // pred_region
      %91 = dma.done [#allocation10], 5120
    $region45: #{tpu_custom_call.1} parent=1 // pred_fallthru
      _
    // Predicated region
    $region46: #{tpu_custom_call.1} parent=1 // pred_check
      _
    $region47: #{tpu_custom_call.1} parent=1 // pred_check_branch
      %93 = sbr.rel (0) target = $region49
    $region48: #{tpu_custom_call.1} parent=1 // pred_region
      %94 = dma.done [#allocation10], 5120
    $region49: #{tpu_custom_call.1} parent=1 // pred_fallthru
      _
    %p96 = scmp.eq.s32.totalorder 0, 0
    // Predicated region
    $region50: #{tpu_custom_call.1} parent=1 // pred_check
      %p97 = pneg %p96
    $region51: #{tpu_custom_call.1} parent=1 // pred_check_branch
      %99 = sbr.rel (%p97) target = $region53
    $region52: #{tpu_custom_call.1} parent=1 // pred_region
      %100 = vst [vmem:[#allocation2] sm:$0xff] 0.0
      %101 = vst [vmem:[#allocation2 + $0x8] sm:$0xff] 0.0
      %102 = vst [vmem:[#allocation2 + $0x10] sm:$0xff] 0.0
      %103 = vst [vmem:[#allocation2 + $0x18] sm:$0xff] 0.0
      %104 = vst [vmem:[#allocation2 + $0x20] sm:$0xff] 0.0
      %105 = vst [vmem:[#allocation2 + $0x28] sm:$0xff] 0.0
      %106 = vst [vmem:[#allocation2 + $0x30] sm:$0xff] 0.0
      %107 = vst [vmem:[#allocation2 + $0x38] sm:$0xff] 0.0
      %108 = vst [vmem:[#allocation2 + $0x40] sm:$0xff] 0.0
      %109 = vst [vmem:[#allocation2 + $0x48] sm:$0xff] 0.0
      %110 = vst [vmem:[#allocation2 + $0x50] sm:$0xff] 0.0
      %111 = vst [vmem:[#allocation2 + $0x58] sm:$0xff] 0.0
      %112 = vst [vmem:[#allocation2 + $0x60] sm:$0xff] 0.0
      %113 = vst [vmem:[#allocation2 + $0x68] sm:$0xff] 0.0
      %114 = vst [vmem:[#allocation2 + $0x70] sm:$0xff] 0.0
      %115 = vst [vmem:[#allocation2 + $0x78] sm:$0xff] 0.0
    $region53: #{tpu_custom_call.1} parent=1 // pred_fallthru
      _
    %v116 = vld [vmem:[#allocation2] sm:$0xff]
    %v117 = vld [vmem:[#allocation2 + $0x8] sm:$0xff]
    %v118 = vld [vmem:[#allocation2 + $0x10] sm:$0xff]
    %v119 = vld [vmem:[#allocation2 + $0x18] sm:$0xff]
    %v120 = vld [vmem:[#allocation2 + $0x20] sm:$0xff]
    %v121 = vld [vmem:[#allocation2 + $0x28] sm:$0xff]
    %v122 = vld [vmem:[#allocation2 + $0x30] sm:$0xff]
    %v123 = vld [vmem:[#allocation2 + $0x38] sm:$0xff]
    %v124 = vld [vmem:[#allocation2 + $0x40] sm:$0xff]
    %v125 = vld [vmem:[#allocation2 + $0x48] sm:$0xff]
    %v126 = vld [vmem:[#allocation2 + $0x50] sm:$0xff]
    %v127 = vld [vmem:[#allocation2 + $0x58] sm:$0xff]
    %v128 = vld [vmem:[#allocation2 + $0x60] sm:$0xff]
    %v129 = vld [vmem:[#allocation2 + $0x68] sm:$0xff]
    %v130 = vld [vmem:[#allocation2 + $0x70] sm:$0xff]
    %v131 = vld [vmem:[#allocation2 + $0x78] sm:$0xff]
    %v132 = vld [vmem:[#allocation3] sm:$0xf]
    %v133 = vld [vmem:[#allocation3 + $0x4] sm:$0xf]
    %v134 = vld [vmem:[#allocation3 + $0x8] sm:$0xf]
    %v135 = vld [vmem:[#allocation3 + $0xc] sm:$0xf]
    %v136 = vld [vmem:[#allocation3 + $0x10] sm:$0xf]
    %v137 = vld [vmem:[#allocation3 + $0x14] sm:$0xf]
    %v138 = vld [vmem:[#allocation3 + $0x18] sm:$0xf]
    %v139 = vld [vmem:[#allocation3 + $0x1c] sm:$0xf]
    %v140 = vld [vmem:[#allocation3 + $0x20] sm:$0xf]
    %v141 = vld [vmem:[#allocation3 + $0x24] sm:$0xf]
    %v142 = vld [vmem:[#allocation3 + $0x28] sm:$0xf]
    %v143 = vld [vmem:[#allocation3 + $0x2c] sm:$0xf]
    %v144 = vld [vmem:[#allocation3 + $0x30] sm:$0xf]
    %v145 = vld [vmem:[#allocation3 + $0x34] sm:$0xf]
    %v146 = vld [vmem:[#allocation3 + $0x38] sm:$0xf]
    %v147 = vld [vmem:[#allocation3 + $0x3c] sm:$0xf]
    %v148 = vld [vmem:[#allocation6] sm:$0xf]
    %v149 = vld [vmem:[#allocation6 + $0x4] sm:$0xf]
    %v150 = vld [vmem:[#allocation6 + $0x8] sm:$0xf]
    %v151 = vld [vmem:[#allocation6 + $0xc] sm:$0xf]
    %v152 = vld [vmem:[#allocation6 + $0x10] sm:$0xf]
    %v153 = vld [vmem:[#allocation6 + $0x14] sm:$0xf]
    %v154 = vld [vmem:[#allocation6 + $0x18] sm:$0xf]
    %v155 = vld [vmem:[#allocation6 + $0x1c] sm:$0xf]
    %v156 = vld [vmem:[#allocation6 + $0x20] sm:$0xf]
    %v157 = vld [vmem:[#allocation6 + $0x24] sm:$0xf]
    %v158 = vld [vmem:[#allocation6 + $0x28] sm:$0xf]
    %v159 = vld [vmem:[#allocation6 + $0x2c] sm:$0xf]
    %v160 = vld [vmem:[#allocation6 + $0x30] sm:$0xf]
    %v161 = vld [vmem:[#allocation6 + $0x34] sm:$0xf]
    %v162 = vld [vmem:[#allocation6 + $0x38] sm:$0xf]
    %v163 = vld [vmem:[#allocation6 + $0x3c] sm:$0xf]
    %v180 = vunpack.c.l.b16 %v132
    %v181 = vunpack.c.l.b16 %v133
    %v182 = vunpack.c.l.b16 %v134
    %v183 = vunpack.c.l.b16 %v135
    %v184 = vunpack.c.l.b16 %v136
    %v185 = vunpack.c.l.b16 %v137
    %v186 = vunpack.c.l.b16 %v138
    %v187 = vunpack.c.l.b16 %v139
    %v188 = vunpack.c.l.b16 %v140
    %v189 = vunpack.c.l.b16 %v141
    %v190 = vunpack.c.l.b16 %v142
    %v191 = vunpack.c.l.b16 %v143
    %v192 = vunpack.c.l.b16 %v144
    %v193 = vunpack.c.l.b16 %v145
    %v194 = vunpack.c.l.b16 %v146
    %v195 = vunpack.c.l.b16 %v147
    %v196 = vpack.c.b16 %v181, %v180
    %v197 = vpack.c.b16 %v183, %v182
    %v198 = vpack.c.b16 %v185, %v184
    %v199 = vpack.c.b16 %v187, %v186
    %v200 = vpack.c.b16 %v189, %v188
    %v201 = vpack.c.b16 %v191, %v190
    %v202 = vpack.c.b16 %v193, %v192
    %v203 = vpack.c.b16 %v195, %v194
    %v228 = vunpack.c.l.b16 %v148
    %v229 = vunpack.c.l.b16 %v149
    %v230 = vunpack.c.l.b16 %v150
    %v231 = vunpack.c.l.b16 %v151
    %v232 = vunpack.c.l.b16 %v152
    %v233 = vunpack.c.l.b16 %v153
    %v234 = vunpack.c.l.b16 %v154
    %v235 = vunpack.c.l.b16 %v155
    %v236 = vunpack.c.l.b16 %v156
    %v237 = vunpack.c.l.b16 %v157
    %v238 = vunpack.c.l.b16 %v158
    %v239 = vunpack.c.l.b16 %v159
    %v240 = vunpack.c.l.b16 %v160
    %v241 = vunpack.c.l.b16 %v161
    %v242 = vunpack.c.l.b16 %v162
    %v243 = vunpack.c.l.b16 %v163
    %v244 = vpack.c.b16 %v229, %v228
    %v245 = vpack.c.b16 %v231, %v230
    %v246 = vpack.c.b16 %v233, %v232
    %v247 = vpack.c.b16 %v235, %v234
    %v248 = vpack.c.b16 %v237, %v236
    %v249 = vpack.c.b16 %v239, %v238
    %v250 = vpack.c.b16 %v241, %v240
    %v251 = vpack.c.b16 %v243, %v242
    %260 = vmatprep.subr.bf16.mxu0 0
    %261 = vmatpush1.bf16.msra.mxu0 %v244
    %262 = vmatprep.subr.bf16.mxu0 0
    %263 = vmatpush1.bf16.msra.mxu0 %v245
    %264 = vmatprep.subr.bf16.mxu0 0
    %265 = vmatpush1.bf16.msra.mxu0 %v246
    %266 = vmatprep.subr.bf16.mxu0 0
    %267 = vmatpush1.bf16.msra.mxu0 %v247
    %268 = vmatprep.subr.bf16.mxu0 0
    %269 = vmatpush1.bf16.msra.mxu0 %v248
    %270 = vmatprep.subr.bf16.mxu0 0
    %271 = vmatpush1.bf16.msra.mxu0 %v249
    %272 = vmatprep.subr.bf16.mxu0 0
    %273 = vmatpush1.bf16.msra.mxu0 %v250
    %274 = vmatprep.subr.bf16.mxu0 0
    %275 = vmatpush1.bf16.msra.mxu0 %v251
    %276 = vmatprep.subr.bf16.mxu0 0
    %277 = vmatpush1.bf16.msra.mxu0 0
    %278 = vmatprep.subr.bf16.mxu0 0
    %279 = vmatpush1.bf16.msra.mxu0 0
    %280 = vmatprep.subr.bf16.mxu0 0
    %281 = vmatpush1.bf16.msra.mxu0 0
    %282 = vmatprep.subr.bf16.mxu0 0
    %283 = vmatpush1.bf16.msra.mxu0 0
    %284 = vmatprep.subr.bf16.mxu0 0
    %285 = vmatpush1.bf16.msra.mxu0 0
    %286 = vmatprep.subr.bf16.mxu0 0
    %287 = vmatpush1.bf16.msra.mxu0 0
    %288 = vmatprep.subr.bf16.mxu0 0
    %289 = vmatpush1.bf16.msra.mxu0 0
    %290 = vmatprep.subr.bf16.mxu0 0
    %291 = vmatpush1.bf16.msra.mxu0 0
    %292 = vmatprep.mubr.bf16.mxu0 0
    %293 = vmatmul.mubr.bf16.gmra.mrb[0].mxu0 %v196
    %v294 = vpop.f32.mrb[0].mxu0
    %v295 = vadd.f32 0.0, %v294
    %v296 = vpop.f32.mrb[0].mxu0
    %v297 = vpop.f32.mrb[0].mxu0
    %v298 = vadd.f32 0.0, %v297
    %v299 = vpop.f32.mrb[0].mxu0
    %300 = vmatprep.mubr.bf16.mxu0 0
    %301 = vmatmul.mubr.bf16.gmra.mrb[0].mxu0 %v197
    %v302 = vpop.f32.mrb[0].mxu0
    %v303 = vadd.f32 0.0, %v302
    %v304 = vpop.f32.mrb[0].mxu0
    %v305 = vpop.f32.mrb[0].mxu0
    %v306 = vadd.f32 0.0, %v305
    %v307 = vpop.f32.mrb[0].mxu0
    %308 = vmatprep.mubr.bf16.mxu0 0
    %309 = vmatmul.mubr.bf16.gmra.mrb[0].mxu0 %v198
    %v310 = vpop.f32.mrb[0].mxu0
    %v311 = vadd.f32 0.0, %v310
    %v312 = vpop.f32.mrb[0].mxu0
    %v313 = vpop.f32.mrb[0].mxu0
    %v314 = vadd.f32 0.0, %v313
    %v315 = vpop.f32.mrb[0].mxu0
    %316 = vmatprep.mubr.bf16.mxu0 0
    %317 = vmatmul.mubr.bf16.gmra.mrb[0].mxu0 %v199
    %v318 = vpop.f32.mrb[0].mxu0
    %v319 = vadd.f32 0.0, %v318
    %v320 = vpop.f32.mrb[0].mxu0
    %v321 = vpop.f32.mrb[0].mxu0
    %v322 = vadd.f32 0.0, %v321
    %v323 = vpop.f32.mrb[0].mxu0
    %324 = vmatprep.mubr.bf16.mxu0 0
    %325 = vmatmul.mubr.bf16.gmra.mrb[0].mxu0 %v200
    %v326 = vpop.f32.mrb[0].mxu0
    %v327 = vadd.f32 0.0, %v326
    %v328 = vpop.f32.mrb[0].mxu0
    %v329 = vpop.f32.mrb[0].mxu0
    %v330 = vadd.f32 0.0, %v329
    %v331 = vpop.f32.mrb[0].mxu0
    %332 = vmatprep.mubr.bf16.mxu0 0
    %333 = vmatmul.mubr.bf16.gmra.mrb[0].mxu0 %v201
    %v334 = vpop.f32.mrb[0].mxu0
    %v335 = vadd.f32 0.0, %v334
    %v336 = vpop.f32.mrb[0].mxu0
    %v337 = vpop.f32.mrb[0].mxu0
    %v338 = vadd.f32 0.0, %v337
    %v339 = vpop.f32.mrb[0].mxu0
    %340 = vmatprep.mubr.bf16.mxu0 0
    %341 = vmatmul.mubr.bf16.gmra.mrb[0].mxu0 %v202
    %v342 = vpop.f32.mrb[0].mxu0
    %v343 = vadd.f32 0.0, %v342
    %v344 = vpop.f32.mrb[0].mxu0
    %v345 = vpop.f32.mrb[0].mxu0
    %v346 = vadd.f32 0.0, %v345
    %v347 = vpop.f32.mrb[0].mxu0
    %348 = vmatprep.mubr.bf16.mxu0 0
    %349 = vmatmul.mubr.bf16.gmra.mrb[0].mxu0 %v203
    %v350 = vpop.f32.mrb[0].mxu0
    %v351 = vadd.f32 0.0, %v350
    %v352 = vpop.f32.mrb[0].mxu0
    %v353 = vpop.f32.mrb[0].mxu0
    %v354 = vadd.f32 0.0, %v353
    %v355 = vpop.f32.mrb[0].mxu0
    %356 = vdwg.mxu0
    %v357 = vadd.f32 %v116, %v295
    %v358 = vadd.f32 %v117, %v298
    %v359 = vadd.f32 %v118, %v303
    %v360 = vadd.f32 %v119, %v306
    %v361 = vadd.f32 %v120, %v311
    %v362 = vadd.f32 %v121, %v314
    %v363 = vadd.f32 %v122, %v319
    %v364 = vadd.f32 %v123, %v322
    %v365 = vadd.f32 %v124, %v327
    %v366 = vadd.f32 %v125, %v330
    %v367 = vadd.f32 %v126, %v335
    %v368 = vadd.f32 %v127, %v338
    %v369 = vadd.f32 %v128, %v343
    %v370 = vadd.f32 %v129, %v346
    %v371 = vadd.f32 %v130, %v351
    %v372 = vadd.f32 %v131, %v354
    %373 = vst [vmem:[#allocation2] sm:$0xff] %v357
    %374 = vst [vmem:[#allocation2 + $0x8] sm:$0xff] %v358
    %375 = vst [vmem:[#allocation2 + $0x10] sm:$0xff] %v359
    %376 = vst [vmem:[#allocation2 + $0x18] sm:$0xff] %v360
    %377 = vst [vmem:[#allocation2 + $0x20] sm:$0xff] %v361
    %378 = vst [vmem:[#allocation2 + $0x28] sm:$0xff] %v362
    %379 = vst [vmem:[#allocation2 + $0x30] sm:$0xff] %v363
    %380 = vst [vmem:[#allocation2 + $0x38] sm:$0xff] %v364
    %381 = vst [vmem:[#allocation2 + $0x40] sm:$0xff] %v365
    %382 = vst [vmem:[#allocation2 + $0x48] sm:$0xff] %v366
    %383 = vst [vmem:[#allocation2 + $0x50] sm:$0xff] %v367
    %384 = vst [vmem:[#allocation2 + $0x58] sm:$0xff] %v368
    %385 = vst [vmem:[#allocation2 + $0x60] sm:$0xff] %v369
    %386 = vst [vmem:[#allocation2 + $0x68] sm:$0xff] %v370
    %387 = vst [vmem:[#allocation2 + $0x70] sm:$0xff] %v371
    %388 = vst [vmem:[#allocation2 + $0x78] sm:$0xff] %v372
    // Predicated region
    $region54: #{tpu_custom_call.1} parent=1 // pred_check
      %p389 = pneg %p96
    $region55: #{tpu_custom_call.1} parent=1 // pred_check_branch
      %391 = sbr.rel (%p389) target = $region57
    $region56: #{tpu_custom_call.1} parent=1 // pred_region
      %v392 = vld [vmem:[#allocation2] sm:$0xff]
      %v393 = vld [vmem:[#allocation2 + $0x8] sm:$0xff]
      %v394 = vld [vmem:[#allocation2 + $0x10] sm:$0xff]
      %v395 = vld [vmem:[#allocation2 + $0x18] sm:$0xff]
      %v396 = vld [vmem:[#allocation2 + $0x20] sm:$0xff]
      %v397 = vld [vmem:[#allocation2 + $0x28] sm:$0xff]
      %v398 = vld [vmem:[#allocation2 + $0x30] sm:$0xff]
      %v399 = vld [vmem:[#allocation2 + $0x38] sm:$0xff]
      %v400 = vld [vmem:[#allocation2 + $0x40] sm:$0xff]
      %v401 = vld [vmem:[#allocation2 + $0x48] sm:$0xff]
      %v402 = vld [vmem:[#allocation2 + $0x50] sm:$0xff]
      %v403 = vld [vmem:[#allocation2 + $0x58] sm:$0xff]
      %v404 = vld [vmem:[#allocation2 + $0x60] sm:$0xff]
      %v405 = vld [vmem:[#allocation2 + $0x68] sm:$0xff]
      %v406 = vld [vmem:[#allocation2 + $0x70] sm:$0xff]
      %v407 = vld [vmem:[#allocation2 + $0x78] sm:$0xff]
      %v408 = vpack.c.bf16 %v393, %v392
      %v409 = vpack.c.bf16 %v395, %v394
      %v410 = vpack.c.bf16 %v397, %v396
      %v411 = vpack.c.bf16 %v399, %v398
      %v412 = vpack.c.bf16 %v401, %v400
      %v413 = vpack.c.bf16 %v403, %v402
      %v414 = vpack.c.bf16 %v405, %v404
      %v415 = vpack.c.bf16 %v407, %v406
      %v416 = vld [vmem:[#allocation8] sm:$0xf]
      %v417 = vld [vmem:[#allocation8 + $0x4] sm:$0xf]
      %v418 = vld [vmem:[#allocation8 + $0x8] sm:$0xf]
      %v419 = vld [vmem:[#allocation8 + $0xc] sm:$0xf]
      %v420 = vld [vmem:[#allocation8 + $0x10] sm:$0xf]
      %v421 = vld [vmem:[#allocation8 + $0x14] sm:$0xf]
      %v422 = vld [vmem:[#allocation8 + $0x18] sm:$0xf]
      %v423 = vld [vmem:[#allocation8 + $0x1c] sm:$0xf]
      %v424 = vld [vmem:[#allocation8 + $0x20] sm:$0xf]
      %v425 = vld [vmem:[#allocation8 + $0x24] sm:$0xf]
      %v426 = vld [vmem:[#allocation8 + $0x28] sm:$0xf]
      %v427 = vld [vmem:[#allocation8 + $0x2c] sm:$0xf]
      %v428 = vld [vmem:[#allocation8 + $0x30] sm:$0xf]
      %v429 = vld [vmem:[#allocation8 + $0x34] sm:$0xf]
      %v430 = vld [vmem:[#allocation8 + $0x38] sm:$0xf]
      %v431 = vld [vmem:[#allocation8 + $0x3c] sm:$0xf]
      %v432 = vld [vmem:[#allocation9] sm:$0xff]
      %v433 = vld [vmem:[#allocation9 + $0x14] sm:$0xff]
      %v434 = vld [vmem:[#allocation9 + $0x28] sm:$0xff]
      %v435 = vld [vmem:[#allocation9 + $0x3c] sm:$0xff]
      %v436 = vld [vmem:[#allocation9 + $0x50] sm:$0xff]
      %v437 = vld [vmem:[#allocation9 + $0x64] sm:$0xff]
      %v438 = vld [vmem:[#allocation9 + $0x78] sm:$0xff]
      %v439 = vld [vmem:[#allocation9 + $0x8c] sm:$0xff]
      %v440 = vld [vmem:[#allocation9 + $0xa0] sm:$0xff]
      %v441 = vld [vmem:[#allocation9 + $0xb4] sm:$0xff]
      %v442 = vld [vmem:[#allocation9 + $0xc8] sm:$0xff]
      %v443 = vld [vmem:[#allocation9 + $0xdc] sm:$0xff]
      %v444 = vld [vmem:[#allocation9 + $0xf0] sm:$0xff]
      %v445 = vld [vmem:[#allocation9 + $0x104] sm:$0xff]
      %v446 = vld [vmem:[#allocation9 + $0x118] sm:$0xff]
      %v447 = vld [vmem:[#allocation9 + $0x12c] sm:$0xff]
      %v448 = vld [vmem:[#allocation11] sm:$0xff]
      %v449 = vld [vmem:[#allocation11 + $0x14] sm:$0xff]
      %v450 = vld [vmem:[#allocation11 + $0x28] sm:$0xff]
      %v451 = vld [vmem:[#allocation11 + $0x3c] sm:$0xff]
      %v452 = vld [vmem:[#allocation11 + $0x50] sm:$0xff]
      %v453 = vld [vmem:[#allocation11 + $0x64] sm:$0xff]
      %v454 = vld [vmem:[#allocation11 + $0x78] sm:$0xff]
      %v455 = vld [vmem:[#allocation11 + $0x8c] sm:$0xff]
      %v456 = vld [vmem:[#allocation11 + $0xa0] sm:$0xff]
      %v457 = vld [vmem:[#allocation11 + $0xb4] sm:$0xff]
      %v458 = vld [vmem:[#allocation11 + $0xc8] sm:$0xff]
      %v459 = vld [vmem:[#allocation11 + $0xdc] sm:$0xff]
      %v460 = vld [vmem:[#allocation11 + $0xf0] sm:$0xff]
      %v461 = vld [vmem:[#allocation11 + $0x104] sm:$0xff]
      %v462 = vld [vmem:[#allocation11 + $0x118] sm:$0xff]
      %v463 = vld [vmem:[#allocation11 + $0x12c] sm:$0xff]
      %v480 = vunpack.c.l.b16 %v416
      %v481 = vunpack.c.l.b16 %v417
      %v482 = vunpack.c.l.b16 %v418
      %v483 = vunpack.c.l.b16 %v419
      %v484 = vunpack.c.l.b16 %v420
      %v485 = vunpack.c.l.b16 %v421
      %v486 = vunpack.c.l.b16 %v422
      %v487 = vunpack.c.l.b16 %v423
      %v488 = vunpack.c.l.b16 %v424
      %v489 = vunpack.c.l.b16 %v425
      %v490 = vunpack.c.l.b16 %v426
      %v491 = vunpack.c.l.b16 %v427
      %v492 = vunpack.c.l.b16 %v428
      %v493 = vunpack.c.l.b16 %v429
      %v494 = vunpack.c.l.b16 %v430
      %v495 = vunpack.c.l.b16 %v431
      %v496 = vpack.c.b16 %v481, %v480
      %v497 = vpack.c.b16 %v483, %v482
      %v498 = vpack.c.b16 %v485, %v484
      %v499 = vpack.c.b16 %v487, %v486
      %v500 = vpack.c.b16 %v489, %v488
      %v501 = vpack.c.b16 %v491, %v490
      %v502 = vpack.c.b16 %v493, %v492
      %v503 = vpack.c.b16 %v495, %v494
      %v528 = vunpack.c.l.b16 %v448
      %v529 = vunpack.c.h.b16 %v448
      %v530 = vunpack.c.l.b16 %v449
      %v531 = vunpack.c.h.b16 %v449
      %v532 = vunpack.c.l.b16 %v450
      %v533 = vunpack.c.h.b16 %v450
      %v534 = vunpack.c.l.b16 %v451
      %v535 = vunpack.c.h.b16 %v451
      %v536 = vunpack.c.l.b16 %v452
      %v537 = vunpack.c.h.b16 %v452
      %v538 = vunpack.c.l.b16 %v453
      %v539 = vunpack.c.h.b16 %v453
      %v540 = vunpack.c.l.b16 %v454
      %v541 = vunpack.c.h.b16 %v454
      %v542 = vunpack.c.l.b16 %v455
      %v543 = vunpack.c.h.b16 %v455
      %v544 = vunpack.c.l.b16 %v456
      %v545 = vunpack.c.h.b16 %v456
      %v546 = vunpack.c.l.b16 %v457
      %v547 = vunpack.c.h.b16 %v457
      %v548 = vunpack.c.l.b16 %v458
      %v549 = vunpack.c.h.b16 %v458
      %v550 = vunpack.c.l.b16 %v459
      %v551 = vunpack.c.h.b16 %v459
      %v552 = vunpack.c.l.b16 %v460
      %v553 = vunpack.c.h.b16 %v460
      %v554 = vunpack.c.l.b16 %v461
      %v555 = vunpack.c.h.b16 %v461
      %v556 = vunpack.c.l.b16 %v462
      %v557 = vunpack.c.h.b16 %v462
      %v558 = vunpack.c.l.b16 %v463
      %v559 = vunpack.c.h.b16 %v463
      %v560 = vpack.c.b16 %v530, %v528
      %v561 = vpack.c.b16 %v531, %v529
      %v562 = vpack.c.b16 %v534, %v532
      %v563 = vpack.c.b16 %v535, %v533
      %v564 = vpack.c.b16 %v538, %v536
      %v565 = vpack.c.b16 %v539, %v537
      %v566 = vpack.c.b16 %v542, %v540
      %v567 = vpack.c.b16 %v543, %v541
      %v568 = vpack.c.b16 %v546, %v544
      %v569 = vpack.c.b16 %v547, %v545
      %v570 = vpack.c.b16 %v550, %v548
      %v571 = vpack.c.b16 %v551, %v549
      %v572 = vpack.c.b16 %v554, %v552
      %v573 = vpack.c.b16 %v555, %v553
      %v574 = vpack.c.b16 %v558, %v556
      %v575 = vpack.c.b16 %v559, %v557
      %592 = vmatprep.subr.bf16.mxu0 %v561
      %593 = vmatpush1.bf16.msra.mxu0 %v560
      %594 = vmatprep.subr.bf16.mxu0 %v563
      %595 = vmatpush1.bf16.msra.mxu0 %v562
      %596 = vmatprep.subr.bf16.mxu0 %v565
      %597 = vmatpush1.bf16.msra.mxu0 %v564
      %598 = vmatprep.subr.bf16.mxu0 %v567
      %599 = vmatpush1.bf16.msra.mxu0 %v566
      %600 = vmatprep.subr.bf16.mxu0 %v569
      %601 = vmatpush1.bf16.msra.mxu0 %v568
      %602 = vmatprep.subr.bf16.mxu0 %v571
      %603 = vmatpush1.bf16.msra.mxu0 %v570
      %604 = vmatprep.subr.bf16.mxu0 %v573
      %605 = vmatpush1.bf16.msra.mxu0 %v572
      %606 = vmatprep.subr.bf16.mxu0 %v575
      %607 = vmatpush1.bf16.msra.mxu0 %v574
      %608 = vmatprep.subr.bf16.mxu0 0
      %609 = vmatpush1.bf16.msra.mxu0 0
      %610 = vmatprep.subr.bf16.mxu0 0
      %611 = vmatpush1.bf16.msra.mxu0 0
      %612 = vmatprep.subr.bf16.mxu0 0
      %613 = vmatpush1.bf16.msra.mxu0 0
      %614 = vmatprep.subr.bf16.mxu0 0
      %615 = vmatpush1.bf16.msra.mxu0 0
      %616 = vmatprep.subr.bf16.mxu0 0
      %617 = vmatpush1.bf16.msra.mxu0 0
      %618 = vmatprep.subr.bf16.mxu0 0
      %619 = vmatpush1.bf16.msra.mxu0 0
      %620 = vmatprep.subr.bf16.mxu0 0
      %621 = vmatpush1.bf16.msra.mxu0 0
      %622 = vmatprep.subr.bf16.mxu0 0
      %623 = vmatpush1.bf16.msra.mxu0 0
      %624 = vmatprep.mubr.bf16.mxu0 0
      %625 = vmatmul.mubr.bf16.gmra.mrb[0].mxu0 %v496
      %v626 = vpop.f32.mrb[0].mxu0
      %v627 = vadd.f32 0.0, %v626
      %v628 = vpop.f32.mrb[0].mxu0
      %v629 = vadd.f32 0.0, %v628
      %v630 = vpop.f32.mrb[0].mxu0
      %v631 = vadd.f32 0.0, %v630
      %v632 = vpop.f32.mrb[0].mxu0
      %v633 = vadd.f32 0.0, %v632
      %634 = vmatprep.mubr.bf16.mxu0 0
      %635 = vmatmul.mubr.bf16.gmra.mrb[0].mxu0 %v497
      %v636 = vpop.f32.mrb[0].mxu0
      %v637 = vadd.f32 0.0, %v636
      %v638 = vpop.f32.mrb[0].mxu0
      %v639 = vadd.f32 0.0, %v638
      %v640 = vpop.f32.mrb[0].mxu0
      %v641 = vadd.f32 0.0, %v640
      %v642 = vpop.f32.mrb[0].mxu0
      %v643 = vadd.f32 0.0, %v642
      %644 = vmatprep.mubr.bf16.mxu0 0
      %645 = vmatmul.mubr.bf16.gmra.mrb[0].mxu0 %v498
      %v646 = vpop.f32.mrb[0].mxu0
      %v647 = vadd.f32 0.0, %v646
      %v648 = vpop.f32.mrb[0].mxu0
      %v649 = vadd.f32 0.0, %v648
      %v650 = vpop.f32.mrb[0].mxu0
      %v651 = vadd.f32 0.0, %v650
      %v652 = vpop.f32.mrb[0].mxu0
      %v653 = vadd.f32 0.0, %v652
      %654 = vmatprep.mubr.bf16.mxu0 0
      %655 = vmatmul.mubr.bf16.gmra.mrb[0].mxu0 %v499
      %v656 = vpop.f32.mrb[0].mxu0
      %v657 = vadd.f32 0.0, %v656
      %v658 = vpop.f32.mrb[0].mxu0
      %v659 = vadd.f32 0.0, %v658
      %v660 = vpop.f32.mrb[0].mxu0
      %v661 = vadd.f32 0.0, %v660
      %v662 = vpop.f32.mrb[0].mxu0
      %v663 = vadd.f32 0.0, %v662
      %664 = vmatprep.mubr.bf16.mxu0 0
      %665 = vmatmul.mubr.bf16.gmra.mrb[0].mxu0 %v500
      %v666 = vpop.f32.mrb[0].mxu0
      %v667 = vadd.f32 0.0, %v666
      %v668 = vpop.f32.mrb[0].mxu0
      %v669 = vadd.f32 0.0, %v668
      %v670 = vpop.f32.mrb[0].mxu0
      %v671 = vadd.f32 0.0, %v670
      %v672 = vpop.f32.mrb[0].mxu0
      %v673 = vadd.f32 0.0, %v672
      %674 = vmatprep.mubr.bf16.mxu0 0
      %675 = vmatmul.mubr.bf16.gmra.mrb[0].mxu0 %v501
      %v676 = vpop.f32.mrb[0].mxu0
      %v677 = vadd.f32 0.0, %v676
      %v678 = vpop.f32.mrb[0].mxu0
      %v679 = vadd.f32 0.0, %v678
      %v680 = vpop.f32.mrb[0].mxu0
      %v681 = vadd.f32 0.0, %v680
      %v682 = vpop.f32.mrb[0].mxu0
      %v683 = vadd.f32 0.0, %v682
      %684 = vmatprep.mubr.bf16.mxu0 0
      %685 = vmatmul.mubr.bf16.gmra.mrb[0].mxu0 %v502
      %v686 = vpop.f32.mrb[0].mxu0
      %v687 = vadd.f32 0.0, %v686
      %v688 = vpop.f32.mrb[0].mxu0
      %v689 = vadd.f32 0.0, %v688
      %v690 = vpop.f32.mrb[0].mxu0
      %v691 = vadd.f32 0.0, %v690
      %v692 = vpop.f32.mrb[0].mxu0
      %v693 = vadd.f32 0.0, %v692
      %694 = vmatprep.mubr.bf16.mxu0 0
      %695 = vmatmul.mubr.bf16.gmra.mrb[0].mxu0 %v503
      %v696 = vpop.f32.mrb[0].mxu0
      %v697 = vadd.f32 0.0, %v696
      %v698 = vpop.f32.mrb[0].mxu0
      %v699 = vadd.f32 0.0, %v698
      %v700 = vpop.f32.mrb[0].mxu0
      %v701 = vadd.f32 0.0, %v700
      %v702 = vpop.f32.mrb[0].mxu0
      %v703 = vadd.f32 0.0, %v702
      %704 = vdwg.mxu0
      %v721 = vunpack.c.l.b16 %v432
      %v722 = vunpack.c.h.b16 %v432
      %v723 = vunpack.c.l.b16 %v433
      %v724 = vunpack.c.h.b16 %v433
      %v725 = vunpack.c.l.b16 %v434
      %v726 = vunpack.c.h.b16 %v434
      %v727 = vunpack.c.l.b16 %v435
      %v728 = vunpack.c.h.b16 %v435
      %v729 = vunpack.c.l.b16 %v436
      %v730 = vunpack.c.h.b16 %v436
      %v731 = vunpack.c.l.b16 %v437
      %v732 = vunpack.c.h.b16 %v437
      %v733 = vunpack.c.l.b16 %v438
      %v734 = vunpack.c.h.b16 %v438
      %v735 = vunpack.c.l.b16 %v439
      %v736 = vunpack.c.h.b16 %v439
      %v737 = vunpack.c.l.b16 %v440
      %v738 = vunpack.c.h.b16 %v440
      %v739 = vunpack.c.l.b16 %v441
      %v740 = vunpack.c.h.b16 %v441
      %v741 = vunpack.c.l.b16 %v442
      %v742 = vunpack.c.h.b16 %v442
      %v743 = vunpack.c.l.b16 %v443
      %v744 = vunpack.c.h.b16 %v443
      %v745 = vunpack.c.l.b16 %v444
      %v746 = vunpack.c.h.b16 %v444
      %v747 = vunpack.c.l.b16 %v445
      %v748 = vunpack.c.h.b16 %v445
      %v749 = vunpack.c.l.b16 %v446
      %v750 = vunpack.c.h.b16 %v446
      %v751 = vunpack.c.l.b16 %v447
      %v752 = vunpack.c.h.b16 %v447
      %v753 = vpack.c.b16 %v723, %v721
      %v754 = vpack.c.b16 %v724, %v722
      %v755 = vpack.c.b16 %v727, %v725
      %v756 = vpack.c.b16 %v728, %v726
      %v757 = vpack.c.b16 %v731, %v729
      %v758 = vpack.c.b16 %v732, %v730
      %v759 = vpack.c.b16 %v735, %v733
      %v760 = vpack.c.b16 %v736, %v734
      %v761 = vpack.c.b16 %v739, %v737
      %v762 = vpack.c.b16 %v740, %v738
      %v763 = vpack.c.b16 %v743, %v741
      %v764 = vpack.c.b16 %v744, %v742
      %v765 = vpack.c.b16 %v747, %v745
      %v766 = vpack.c.b16 %v748, %v746
      %v767 = vpack.c.b16 %v751, %v749
      %v768 = vpack.c.b16 %v752, %v750
      %785 = vmatprep.subr.bf16.mxu0 %v754
      %786 = vmatpush1.bf16.msra.mxu0 %v753
      %787 = vmatprep.subr.bf16.mxu0 %v756
      %788 = vmatpush1.bf16.msra.mxu0 %v755
      %789 = vmatprep.subr.bf16.mxu0 %v758
      %790 = vmatpush1.bf16.msra.mxu0 %v757
      %791 = vmatprep.subr.bf16.mxu0 %v760
      %792 = vmatpush1.bf16.msra.mxu0 %v759
      %793 = vmatprep.subr.bf16.mxu0 %v762
      %794 = vmatpush1.bf16.msra.mxu0 %v761
      %795 = vmatprep.subr.bf16.mxu0 %v764
      %796 = vmatpush1.bf16.msra.mxu0 %v763
      %797 = vmatprep.subr.bf16.mxu0 %v766
      %798 = vmatpush1.bf16.msra.mxu0 %v765
      %799 = vmatprep.subr.bf16.mxu0 %v768
      %800 = vmatpush1.bf16.msra.mxu0 %v767
      %801 = vmatprep.subr.bf16.mxu0 0
      %802 = vmatpush1.bf16.msra.mxu0 0
      %803 = vmatprep.subr.bf16.mxu0 0
      %804 = vmatpush1.bf16.msra.mxu0 0
      %805 = vmatprep.subr.bf16.mxu0 0
      %806 = vmatpush1.bf16.msra.mxu0 0
      %807 = vmatprep.subr.bf16.mxu0 0
      %808 = vmatpush1.bf16.msra.mxu0 0
      %809 = vmatprep.subr.bf16.mxu0 0
      %810 = vmatpush1.bf16.msra.mxu0 0
      %811 = vmatprep.subr.bf16.mxu0 0
      %812 = vmatpush1.bf16.msra.mxu0 0
      %813 = vmatprep.subr.bf16.mxu0 0
      %814 = vmatpush1.bf16.msra.mxu0 0
      %815 = vmatprep.subr.bf16.mxu0 0
      %816 = vmatpush1.bf16.msra.mxu0 0
      %817 = vmatprep.mubr.bf16.mxu0 0
      %818 = vmatmul.mubr.bf16.gmra.mrb[0].mxu0 %v408
      %v819 = vpop.f32.mrb[0].mxu0
      %v820 = vadd.f32 %v627, %v819
      %v821 = vpop.f32.mrb[0].mxu0
      %v822 = vadd.f32 %v629, %v821
      %v823 = vpop.f32.mrb[0].mxu0
      %v824 = vadd.f32 %v631, %v823
      %v825 = vpop.f32.mrb[0].mxu0
      %v826 = vadd.f32 %v633, %v825
      %827 = vmatprep.mubr.bf16.mxu0 0
      %828 = vmatmul.mubr.bf16.gmra.mrb[0].mxu0 %v409
      %v829 = vpop.f32.mrb[0].mxu0
      %v830 = vadd.f32 %v637, %v829
      %v831 = vpop.f32.mrb[0].mxu0
      %v832 = vadd.f32 %v639, %v831
      %v833 = vpop.f32.mrb[0].mxu0
      %v834 = vadd.f32 %v641, %v833
      %v835 = vpop.f32.mrb[0].mxu0
      %v836 = vadd.f32 %v643, %v835
      %837 = vmatprep.mubr.bf16.mxu0 0
      %838 = vmatmul.mubr.bf16.gmra.mrb[0].mxu0 %v410
      %v839 = vpop.f32.mrb[0].mxu0
      %v840 = vadd.f32 %v647, %v839
      %v841 = vpop.f32.mrb[0].mxu0
      %v842 = vadd.f32 %v649, %v841
      %v843 = vpop.f32.mrb[0].mxu0
      %v844 = vadd.f32 %v651, %v843
      %v845 = vpop.f32.mrb[0].mxu0
      %v846 = vadd.f32 %v653, %v845
      %847 = vmatprep.mubr.bf16.mxu0 0
      %848 = vmatmul.mubr.bf16.gmra.mrb[0].mxu0 %v411
      %v849 = vpop.f32.mrb[0].mxu0
      %v850 = vadd.f32 %v657, %v849
      %v851 = vpop.f32.mrb[0].mxu0
      %v852 = vadd.f32 %v659, %v851
      %v853 = vpop.f32.mrb[0].mxu0
      %v854 = vadd.f32 %v661, %v853
      %v855 = vpop.f32.mrb[0].mxu0
      %v856 = vadd.f32 %v663, %v855
      %857 = vmatprep.mubr.bf16.mxu0 0
      %858 = vmatmul.mubr.bf16.gmra.mrb[0].mxu0 %v412
      %v859 = vpop.f32.mrb[0].mxu0
      %v860 = vadd.f32 %v667, %v859
      %v861 = vpop.f32.mrb[0].mxu0
      %v862 = vadd.f32 %v669, %v861
      %v863 = vpop.f32.mrb[0].mxu0
      %v864 = vadd.f32 %v671, %v863
      %v865 = vpop.f32.mrb[0].mxu0
      %v866 = vadd.f32 %v673, %v865
      %867 = vmatprep.mubr.bf16.mxu0 0
      %868 = vmatmul.mubr.bf16.gmra.mrb[0].mxu0 %v413
      %v869 = vpop.f32.mrb[0].mxu0
      %v870 = vadd.f32 %v677, %v869
      %v871 = vpop.f32.mrb[0].mxu0
      %v872 = vadd.f32 %v679, %v871
      %v873 = vpop.f32.mrb[0].mxu0
      %v874 = vadd.f32 %v681, %v873
      %v875 = vpop.f32.mrb[0].mxu0
      %v876 = vadd.f32 %v683, %v875
      %877 = vmatprep.mubr.bf16.mxu0 0
      %878 = vmatmul.mubr.bf16.gmra.mrb[0].mxu0 %v414
      %v879 = vpop.f32.mrb[0].mxu0
      %v880 = vadd.f32 %v687, %v879
      %v881 = vpop.f32.mrb[0].mxu0
      %v882 = vadd.f32 %v689, %v881
      %v883 = vpop.f32.mrb[0].mxu0
      %v884 = vadd.f32 %v691, %v883
      %v885 = vpop.f32.mrb[0].mxu0
      %v886 = vadd.f32 %v693, %v885
      %887 = vmatprep.mubr.bf16.mxu0 0
      %888 = vmatmul.mubr.bf16.gmra.mrb[0].mxu0 %v415
      %v889 = vpop.f32.mrb[0].mxu0
      %v890 = vadd.f32 %v697, %v889
      %v891 = vpop.f32.mrb[0].mxu0
      %v892 = vadd.f32 %v699, %v891
      %v893 = vpop.f32.mrb[0].mxu0
      %v894 = vadd.f32 %v701, %v893
      %v895 = vpop.f32.mrb[0].mxu0
      %v896 = vadd.f32 %v703, %v895
      %897 = vdwg.mxu0
      %v898 = vld [vmem:[%s5] sm:$0x3]
      %v900 = vlaneseq
      %v901 = vshrl.u32 %v900, 7
      %v902 = vsub.s32 0, %v901
      %v903 = vrot.slane %v898, %v902
      %v904 = vlaneseq
      %v905 = vshrl.u32 %v904, 7
      %v906 = vsub.s32 1, %v905
      %v907 = vrot.slane %v898, %v906
      %v910 = vadd.f32 %v820, %v903
      %v911 = vadd.f32 %v822, %v907
      %v912 = vadd.f32 %v824, %v903
      %v913 = vadd.f32 %v826, %v907
      %v914 = vadd.f32 %v830, %v903
      %v915 = vadd.f32 %v832, %v907
      %v916 = vadd.f32 %v834, %v903
      %v917 = vadd.f32 %v836, %v907
      %v918 = vadd.f32 %v840, %v903
      %v919 = vadd.f32 %v842, %v907
      %v920 = vadd.f32 %v844, %v903
      %v921 = vadd.f32 %v846, %v907
      %v922 = vadd.f32 %v850, %v903
      %v923 = vadd.f32 %v852, %v907
      %v924 = vadd.f32 %v854, %v903
      %v925 = vadd.f32 %v856, %v907
      %v926 = vadd.f32 %v860, %v903
      %v927 = vadd.f32 %v862, %v907
      %v928 = vadd.f32 %v864, %v903
      %v929 = vadd.f32 %v866, %v907
      %v930 = vadd.f32 %v870, %v903
      %v931 = vadd.f32 %v872, %v907
      %v932 = vadd.f32 %v874, %v903
      %v933 = vadd.f32 %v876, %v907
      %v934 = vadd.f32 %v880, %v903
      %v935 = vadd.f32 %v882, %v907
      %v936 = vadd.f32 %v884, %v903
      %v937 = vadd.f32 %v886, %v907
      %v938 = vadd.f32 %v890, %v903
      %v939 = vadd.f32 %v892, %v907
      %v940 = vadd.f32 %v894, %v903
      %v941 = vadd.f32 %v896, %v907
      %vm942 = vcmp.gt.f32.partialorder %v910, 0.0
      %vm943 = vcmp.gt.f32.partialorder %v911, 0.0
      %vm944 = vcmp.gt.f32.partialorder %v912, 0.0
      %vm945 = vcmp.gt.f32.partialorder %v913, 0.0
      %vm946 = vcmp.gt.f32.partialorder %v914, 0.0
      %vm947 = vcmp.gt.f32.partialorder %v915, 0.0
      %vm948 = vcmp.gt.f32.partialorder %v916, 0.0
      %vm949 = vcmp.gt.f32.partialorder %v917, 0.0
      %vm950 = vcmp.gt.f32.partialorder %v918, 0.0
      %vm951 = vcmp.gt.f32.partialorder %v919, 0.0
      %vm952 = vcmp.gt.f32.partialorder %v920, 0.0
      %vm953 = vcmp.gt.f32.partialorder %v921, 0.0
      %vm954 = vcmp.gt.f32.partialorder %v922, 0.0
      %vm955 = vcmp.gt.f32.partialorder %v923, 0.0
      %vm956 = vcmp.gt.f32.partialorder %v924, 0.0
      %vm957 = vcmp.gt.f32.partialorder %v925, 0.0
      %vm958 = vcmp.gt.f32.partialorder %v926, 0.0
      %vm959 = vcmp.gt.f32.partialorder %v927, 0.0
      %vm960 = vcmp.gt.f32.partialorder %v928, 0.0
      %vm961 = vcmp.gt.f32.partialorder %v929, 0.0
      %vm962 = vcmp.gt.f32.partialorder %v930, 0.0
      %vm963 = vcmp.gt.f32.partialorder %v931, 0.0
      %vm964 = vcmp.gt.f32.partialorder %v932, 0.0
      %vm965 = vcmp.gt.f32.partialorder %v933, 0.0
      %vm966 = vcmp.gt.f32.partialorder %v934, 0.0
      %vm967 = vcmp.gt.f32.partialorder %v935, 0.0
      %vm968 = vcmp.gt.f32.partialorder %v936, 0.0
      %vm969 = vcmp.gt.f32.partialorder %v937, 0.0
      %vm970 = vcmp.gt.f32.partialorder %v938, 0.0
      %vm971 = vcmp.gt.f32.partialorder %v939, 0.0
      %vm972 = vcmp.gt.f32.partialorder %v940, 0.0
      %vm973 = vcmp.gt.f32.partialorder %v941, 0.0
      %v974 = vmin.f32 %v910, 0.0
      %v975 = vmin.f32 %v911, 0.0
      %v976 = vmin.f32 %v912, 0.0
      %v977 = vmin.f32 %v913, 0.0
      %v978 = vmin.f32 %v914, 0.0
      %v979 = vmin.f32 %v915, 0.0
      %v980 = vmin.f32 %v916, 0.0
      %v981 = vmin.f32 %v917, 0.0
      %v982 = vmin.f32 %v918, 0.0
      %v983 = vmin.f32 %v919, 0.0
      %v984 = vmin.f32 %v920, 0.0
      %v985 = vmin.f32 %v921, 0.0
      %v986 = vmin.f32 %v922, 0.0
      %v987 = vmin.f32 %v923, 0.0
      %v988 = vmin.f32 %v924, 0.0
      %v989 = vmin.f32 %v925, 0.0
      %v990 = vmin.f32 %v926, 0.0
      %v991 = vmin.f32 %v927, 0.0
      %v992 = vmin.f32 %v928, 0.0
      %v993 = vmin.f32 %v929, 0.0
      %v994 = vmin.f32 %v930, 0.0
      %v995 = vmin.f32 %v931, 0.0
      %v996 = vmin.f32 %v932, 0.0
      %v997 = vmin.f32 %v933, 0.0
      %v998 = vmin.f32 %v934, 0.0
      %v999 = vmin.f32 %v935, 0.0
      %v1000 = vmin.f32 %v936, 0.0
      %v1001 = vmin.f32 %v937, 0.0
      %v1002 = vmin.f32 %v938, 0.0
      %v1003 = vmin.f32 %v939, 0.0
      %v1004 = vmin.f32 %v940, 0.0
      %v1005 = vmin.f32 %v941, 0.0
      %v1006 = vmul.f32 %v974, 1.442695
      %v1007 = vpow.pop %v1006
      %v1008 = vmul.f32 %v975, 1.442695
      %v1009 = vpow.pop %v1008
      %v1010 = vmul.f32 %v976, 1.442695
      %v1011 = vpow.pop %v1010
      %v1012 = vmul.f32 %v977, 1.442695
      %v1013 = vpow.pop %v1012
      %v1014 = vmul.f32 %v978, 1.442695
      %v1015 = vpow.pop %v1014
      %v1016 = vmul.f32 %v979, 1.442695
      %v1017 = vpow.pop %v1016
      %v1018 = vmul.f32 %v980, 1.442695
      %v1019 = vpow.pop %v1018
      %v1020 = vmul.f32 %v981, 1.442695
      %v1021 = vpow.pop %v1020
      %v1022 = vmul.f32 %v982, 1.442695
      %v1023 = vpow.pop %v1022
      %v1024 = vmul.f32 %v983, 1.442695
      %v1025 = vpow.pop %v1024
      %v1026 = vmul.f32 %v984, 1.442695
      %v1027 = vpow.pop %v1026
      %v1028 = vmul.f32 %v985, 1.442695
      %v1029 = vpow.pop %v1028
      %v1030 = vmul.f32 %v986, 1.442695
      %v1031 = vpow.pop %v1030
      %v1032 = vmul.f32 %v987, 1.442695
      %v1033 = vpow.pop %v1032
      %v1034 = vmul.f32 %v988, 1.442695
      %v1035 = vpow.pop %v1034
      %v1036 = vmul.f32 %v989, 1.442695
      %v1037 = vpow.pop %v1036
      %v1038 = vmul.f32 %v990, 1.442695
      %v1039 = vpow.pop %v1038
      %v1040 = vmul.f32 %v991, 1.442695
      %v1041 = vpow.pop %v1040
      %v1042 = vmul.f32 %v992, 1.442695
      %v1043 = vpow.pop %v1042
      %v1044 = vmul.f32 %v993, 1.442695
      %v1045 = vpow.pop %v1044
      %v1046 = vmul.f32 %v994, 1.442695
      %v1047 = vpow.pop %v1046
      %v1048 = vmul.f32 %v995, 1.442695
      %v1049 = vpow.pop %v1048
      %v1050 = vmul.f32 %v996, 1.442695
      %v1051 = vpow.pop %v1050
      %v1052 = vmul.f32 %v997, 1.442695
      %v1053 = vpow.pop %v1052
      %v1054 = vmul.f32 %v998, 1.442695
      %v1055 = vpow.pop %v1054
      %v1056 = vmul.f32 %v999, 1.442695
      %v1057 = vpow.pop %v1056
      %v1058 = vmul.f32 %v1000, 1.442695
      %v1059 = vpow.pop %v1058
      %v1060 = vmul.f32 %v1001, 1.442695
      %v1061 = vpow.pop %v1060
      %v1062 = vmul.f32 %v1002, 1.442695
      %v1063 = vpow.pop %v1062
      %v1064 = vmul.f32 %v1003, 1.442695
      %v1065 = vpow.pop %v1064
      %v1066 = vmul.f32 %v1004, 1.442695
      %v1067 = vpow.pop %v1066
      %v1068 = vmul.f32 %v1005, 1.442695
      %v1069 = vpow.pop %v1068
      %v1070 = vsub.f32 %v1007, 1.0
      %v1071 = vsub.f32 %v1009, 1.0
      %v1072 = vsub.f32 %v1011, 1.0
      %v1073 = vsub.f32 %v1013, 1.0
      %v1074 = vsub.f32 %v1015, 1.0
      %v1075 = vsub.f32 %v1017, 1.0
      %v1076 = vsub.f32 %v1019, 1.0
      %v1077 = vsub.f32 %v1021, 1.0
      %v1078 = vsub.f32 %v1023, 1.0
      %v1079 = vsub.f32 %v1025, 1.0
      %v1080 = vsub.f32 %v1027, 1.0
      %v1081 = vsub.f32 %v1029, 1.0
      %v1082 = vsub.f32 %v1031, 1.0
      %v1083 = vsub.f32 %v1033, 1.0
      %v1084 = vsub.f32 %v1035, 1.0
      %v1085 = vsub.f32 %v1037, 1.0
      %v1086 = vsub.f32 %v1039, 1.0
      %v1087 = vsub.f32 %v1041, 1.0
      %v1088 = vsub.f32 %v1043, 1.0
      %v1089 = vsub.f32 %v1045, 1.0
      %v1090 = vsub.f32 %v1047, 1.0
      %v1091 = vsub.f32 %v1049, 1.0
      %v1092 = vsub.f32 %v1051, 1.0
      %v1093 = vsub.f32 %v1053, 1.0
      %v1094 = vsub.f32 %v1055, 1.0
      %v1095 = vsub.f32 %v1057, 1.0
      %v1096 = vsub.f32 %v1059, 1.0
      %v1097 = vsub.f32 %v1061, 1.0
      %v1098 = vsub.f32 %v1063, 1.0
      %v1099 = vsub.f32 %v1065, 1.0
      %v1100 = vsub.f32 %v1067, 1.0
      %v1101 = vsub.f32 %v1069, 1.0
      %v1102 = vsel %vm942, %v910, %v1070
      %v1103 = vsel %vm943, %v911, %v1071
      %v1104 = vsel %vm944, %v912, %v1072
      %v1105 = vsel %vm945, %v913, %v1073
      %v1106 = vsel %vm946, %v914, %v1074
      %v1107 = vsel %vm947, %v915, %v1075
      %v1108 = vsel %vm948, %v916, %v1076
      %v1109 = vsel %vm949, %v917, %v1077
      %v1110 = vsel %vm950, %v918, %v1078
      %v1111 = vsel %vm951, %v919, %v1079
      %v1112 = vsel %vm952, %v920, %v1080
      %v1113 = vsel %vm953, %v921, %v1081
      %v1114 = vsel %vm954, %v922, %v1082
      %v1115 = vsel %vm955, %v923, %v1083
      %v1116 = vsel %vm956, %v924, %v1084
      %v1117 = vsel %vm957, %v925, %v1085
      %v1118 = vsel %vm958, %v926, %v1086
      %v1119 = vsel %vm959, %v927, %v1087
      %v1120 = vsel %vm960, %v928, %v1088
      %v1121 = vsel %vm961, %v929, %v1089
      %v1122 = vsel %vm962, %v930, %v1090
      %v1123 = vsel %vm963, %v931, %v1091
      %v1124 = vsel %vm964, %v932, %v1092
      %v1125 = vsel %vm965, %v933, %v1093
      %v1126 = vsel %vm966, %v934, %v1094
      %v1127 = vsel %vm967, %v935, %v1095
      %v1128 = vsel %vm968, %v936, %v1096
      %v1129 = vsel %vm969, %v937, %v1097
      %v1130 = vsel %vm970, %v938, %v1098
      %v1131 = vsel %vm971, %v939, %v1099
      %v1132 = vsel %vm972, %v940, %v1100
      %v1133 = vsel %vm973, %v941, %v1101
      %v1134 = vld [vmem:[%s6] sm:$0x3]
      %v1136 = vlaneseq
      %v1137 = vshrl.u32 %v1136, 7
      %v1138 = vsub.s32 0, %v1137
      %v1139 = vrot.slane %v1134, %v1138
      %v1140 = vlaneseq
      %v1141 = vshrl.u32 %v1140, 7
      %v1142 = vsub.s32 1, %v1141
      %v1143 = vrot.slane %v1134, %v1142
      %v1146 = vmul.f32 %v1102, %v1139
      %v1147 = vmul.f32 %v1103, %v1143
      %v1148 = vmul.f32 %v1104, %v1139
      %v1149 = vmul.f32 %v1105, %v1143
      %v1150 = vmul.f32 %v1106, %v1139
      %v1151 = vmul.f32 %v1107, %v1143
      %v1152 = vmul.f32 %v1108, %v1139
      %v1153 = vmul.f32 %v1109, %v1143
      %v1154 = vmul.f32 %v1110, %v1139
      %v1155 = vmul.f32 %v1111, %v1143
      %v1156 = vmul.f32 %v1112, %v1139
      %v1157 = vmul.f32 %v1113, %v1143
      %v1158 = vmul.f32 %v1114, %v1139
      %v1159 = vmul.f32 %v1115, %v1143
      %v1160 = vmul.f32 %v1116, %v1139
      %v1161 = vmul.f32 %v1117, %v1143
      %v1162 = vmul.f32 %v1118, %v1139
      %v1163 = vmul.f32 %v1119, %v1143
      %v1164 = vmul.f32 %v1120, %v1139
      %v1165 = vmul.f32 %v1121, %v1143
      %v1166 = vmul.f32 %v1122, %v1139
      %v1167 = vmul.f32 %v1123, %v1143
      %v1168 = vmul.f32 %v1124, %v1139
      %v1169 = vmul.f32 %v1125, %v1143
      %v1170 = vmul.f32 %v1126, %v1139
      %v1171 = vmul.f32 %v1127, %v1143
      %v1172 = vmul.f32 %v1128, %v1139
      %v1173 = vmul.f32 %v1129, %v1143
      %v1174 = vmul.f32 %v1130, %v1139
      %v1175 = vmul.f32 %v1131, %v1143
      %v1176 = vmul.f32 %v1132, %v1139
      %v1177 = vmul.f32 %v1133, %v1143
      %v1178 = vadd.f32 %v1146, 0.0
      %v1179 = vadd.f32 %v1148, 0.0
      %v1180 = vadd.f32 %v1150, 0.0
      %v1181 = vadd.f32 %v1152, 0.0
      %v1182 = vadd.f32 %v1154, 0.0
      %v1183 = vadd.f32 %v1156, 0.0
      %v1184 = vadd.f32 %v1158, 0.0
      %v1185 = vadd.f32 %v1160, 0.0
      %v1186 = vadd.f32 %v1162, 0.0
      %v1187 = vadd.f32 %v1164, 0.0
      %v1188 = vadd.f32 %v1166, 0.0
      %v1189 = vadd.f32 %v1168, 0.0
      %v1190 = vadd.f32 %v1170, 0.0
      %v1191 = vadd.f32 %v1172, 0.0
      %v1192 = vadd.f32 %v1174, 0.0
      %v1193 = vadd.f32 %v1176, 0.0
      %v1194 = vadd.f32 %v1178, %v1147
      %v1195 = vadd.f32 %v1179, %v1149
      %v1196 = vadd.f32 %v1180, %v1151
      %v1197 = vadd.f32 %v1181, %v1153
      %v1198 = vadd.f32 %v1182, %v1155
      %v1199 = vadd.f32 %v1183, %v1157
      %v1200 = vadd.f32 %v1184, %v1159
      %v1201 = vadd.f32 %v1185, %v1161
      %v1202 = vadd.f32 %v1186, %v1163
      %v1203 = vadd.f32 %v1187, %v1165
      %v1204 = vadd.f32 %v1188, %v1167
      %v1205 = vadd.f32 %v1189, %v1169
      %v1206 = vadd.f32 %v1190, %v1171
      %v1207 = vadd.f32 %v1191, %v1173
      %v1208 = vadd.f32 %v1192, %v1175
      %v1209 = vadd.f32 %v1193, %v1177
      %v1210 = vld [vmem:[#allocation9 + $0x8] sm:$0xff]
      %v1211 = vld [vmem:[#allocation9 + $0x1c] sm:$0xff]
      %v1212 = vld [vmem:[#allocation9 + $0x30] sm:$0xff]
      %v1213 = vld [vmem:[#allocation9 + $0x44] sm:$0xff]
      %v1214 = vld [vmem:[#allocation9 + $0x58] sm:$0xff]
      %v1215 = vld [vmem:[#allocation9 + $0x6c] sm:$0xff]
      %v1216 = vld [vmem:[#allocation9 + $0x80] sm:$0xff]
      %v1217 = vld [vmem:[#allocation9 + $0x94] sm:$0xff]
      %v1218 = vld [vmem:[#allocation9 + $0xa8] sm:$0xff]
      %v1219 = vld [vmem:[#allocation9 + $0xbc] sm:$0xff]
      %v1220 = vld [vmem:[#allocation9 + $0xd0] sm:$0xff]
      %v1221 = vld [vmem:[#allocation9 + $0xe4] sm:$0xff]
      %v1222 = vld [vmem:[#allocation9 + $0xf8] sm:$0xff]
      %v1223 = vld [vmem:[#allocation9 + $0x10c] sm:$0xff]
      %v1224 = vld [vmem:[#allocation9 + $0x120] sm:$0xff]
      %v1225 = vld [vmem:[#allocation9 + $0x134] sm:$0xff]
      %v1226 = vld [vmem:[#allocation11 + $0x8] sm:$0xff]
      %v1227 = vld [vmem:[#allocation11 + $0x1c] sm:$0xff]
      %v1228 = vld [vmem:[#allocation11 + $0x30] sm:$0xff]
      %v1229 = vld [vmem:[#allocation11 + $0x44] sm:$0xff]
      %v1230 = vld [vmem:[#allocation11 + $0x58] sm:$0xff]
      %v1231 = vld [vmem:[#allocation11 + $0x6c] sm:$0xff]
      %v1232 = vld [vmem:[#allocation11 + $0x80] sm:$0xff]
      %v1233 = vld [vmem:[#allocation11 + $0x94] sm:$0xff]
      %v1234 = vld [vmem:[#allocation11 + $0xa8] sm:$0xff]
      %v1235 = vld [vmem:[#allocation11 + $0xbc] sm:$0xff]
      %v1236 = vld [vmem:[#allocation11 + $0xd0] sm:$0xff]
      %v1237 = vld [vmem:[#allocation11 + $0xe4] sm:$0xff]
      %v1238 = vld [vmem:[#allocation11 + $0xf8] sm:$0xff]
      %v1239 = vld [vmem:[#allocation11 + $0x10c] sm:$0xff]
      %v1240 = vld [vmem:[#allocation11 + $0x120] sm:$0xff]
      %v1241 = vld [vmem:[#allocation11 + $0x134] sm:$0xff]
      %v1258 = vunpack.c.l.b16 %v1226
      %v1259 = vunpack.c.h.b16 %v1226
      %v1260 = vunpack.c.l.b16 %v1227
      %v1261 = vunpack.c.h.b16 %v1227
      %v1262 = vunpack.c.l.b16 %v1228
      %v1263 = vunpack.c.h.b16 %v1228
      %v1264 = vunpack.c.l.b16 %v1229
      %v1265 = vunpack.c.h.b16 %v1229
      %v1266 = vunpack.c.l.b16 %v1230
      %v1267 = vunpack.c.h.b16 %v1230
      %v1268 = vunpack.c.l.b16 %v1231
      %v1269 = vunpack.c.h.b16 %v1231
      %v1270 = vunpack.c.l.b16 %v1232
      %v1271 = vunpack.c.h.b16 %v1232
      %v1272 = vunpack.c.l.b16 %v1233
      %v1273 = vunpack.c.h.b16 %v1233
      %v1274 = vunpack.c.l.b16 %v1234
      %v1275 = vunpack.c.h.b16 %v1234
      %v1276 = vunpack.c.l.b16 %v1235
      %v1277 = vunpack.c.h.b16 %v1235
      %v1278 = vunpack.c.l.b16 %v1236
      %v1279 = vunpack.c.h.b16 %v1236
      %v1280 = vunpack.c.l.b16 %v1237
      %v1281 = vunpack.c.h.b16 %v1237
      %v1282 = vunpack.c.l.b16 %v1238
      %v1283 = vunpack.c.h.b16 %v1238
      %v1284 = vunpack.c.l.b16 %v1239
      %v1285 = vunpack.c.h.b16 %v1239
      %v1286 = vunpack.c.l.b16 %v1240
      %v1287 = vunpack.c.h.b16 %v1240
      %v1288 = vunpack.c.l.b16 %v1241
      %v1289 = vunpack.c.h.b16 %v1241
      %v1290 = vpack.c.b16 %v1260, %v1258
      %v1291 = vpack.c.b16 %v1261, %v1259
      %v1292 = vpack.c.b16 %v1264, %v1262
      %v1293 = vpack.c.b16 %v1265, %v1263
      %v1294 = vpack.c.b16 %v1268, %v1266
      %v1295 = vpack.c.b16 %v1269, %v1267
      %v1296 = vpack.c.b16 %v1272, %v1270
      %v1297 = vpack.c.b16 %v1273, %v1271
      %v1298 = vpack.c.b16 %v1276, %v1274
      %v1299 = vpack.c.b16 %v1277, %v1275
      %v1300 = vpack.c.b16 %v1280, %v1278
      %v1301 = vpack.c.b16 %v1281, %v1279
      %v1302 = vpack.c.b16 %v1284, %v1282
      %v1303 = vpack.c.b16 %v1285, %v1283
      %v1304 = vpack.c.b16 %v1288, %v1286
      %v1305 = vpack.c.b16 %v1289, %v1287
      %1322 = vmatprep.subr.bf16.mxu0 %v1291
      %1323 = vmatpush1.bf16.msra.mxu0 %v1290
      %1324 = vmatprep.subr.bf16.mxu0 %v1293
      %1325 = vmatpush1.bf16.msra.mxu0 %v1292
      %1326 = vmatprep.subr.bf16.mxu0 %v1295
      %1327 = vmatpush1.bf16.msra.mxu0 %v1294
      %1328 = vmatprep.subr.bf16.mxu0 %v1297
      %1329 = vmatpush1.bf16.msra.mxu0 %v1296
      %1330 = vmatprep.subr.bf16.mxu0 %v1299
      %1331 = vmatpush1.bf16.msra.mxu0 %v1298
      %1332 = vmatprep.subr.bf16.mxu0 %v1301
      %1333 = vmatpush1.bf16.msra.mxu0 %v1300
      %1334 = vmatprep.subr.bf16.mxu0 %v1303
      %1335 = vmatpush1.bf16.msra.mxu0 %v1302
      %1336 = vmatprep.subr.bf16.mxu0 %v1305
      %1337 = vmatpush1.bf16.msra.mxu0 %v1304
      %1338 = vmatprep.subr.bf16.mxu0 0
      %1339 = vmatpush1.bf16.msra.mxu0 0
      %1340 = vmatprep.subr.bf16.mxu0 0
      %1341 = vmatpush1.bf16.msra.mxu0 0
      %1342 = vmatprep.subr.bf16.mxu0 0
      %1343 = vmatpush1.bf16.msra.mxu0 0
      %1344 = vmatprep.subr.bf16.mxu0 0
      %1345 = vmatpush1.bf16.msra.mxu0 0
      %1346 = vmatprep.subr.bf16.mxu0 0
      %1347 = vmatpush1.bf16.msra.mxu0 0
      %1348 = vmatprep.subr.bf16.mxu0 0
      %1349 = vmatpush1.bf16.msra.mxu0 0
      %1350 = vmatprep.subr.bf16.mxu0 0
      %1351 = vmatpush1.bf16.msra.mxu0 0
      %1352 = vmatprep.subr.bf16.mxu0 0
      %1353 = vmatpush1.bf16.msra.mxu0 0
      %1354 = vmatprep.mubr.bf16.mxu0 0
      %1355 = vmatmul.mubr.bf16.gmra.mrb[0].mxu0 %v496
      %v1356 = vpop.f32.mrb[0].mxu0
      %v1357 = vadd.f32 0.0, %v1356
      %v1358 = vpop.f32.mrb[0].mxu0
      %v1359 = vadd.f32 0.0, %v1358
      %v1360 = vpop.f32.mrb[0].mxu0
      %v1361 = vadd.f32 0.0, %v1360
      %v1362 = vpop.f32.mrb[0].mxu0
      %v1363 = vadd.f32 0.0, %v1362
      %1364 = vmatprep.mubr.bf16.mxu0 0
      %1365 = vmatmul.mubr.bf16.gmra.mrb[0].mxu0 %v497
      %v1366 = vpop.f32.mrb[0].mxu0
      %v1367 = vadd.f32 0.0, %v1366
      %v1368 = vpop.f32.mrb[0].mxu0
      %v1369 = vadd.f32 0.0, %v1368
      %v1370 = vpop.f32.mrb[0].mxu0
      %v1371 = vadd.f32 0.0, %v1370
      %v1372 = vpop.f32.mrb[0].mxu0
      %v1373 = vadd.f32 0.0, %v1372
      %1374 = vmatprep.mubr.bf16.mxu0 0
      %1375 = vmatmul.mubr.bf16.gmra.mrb[0].mxu0 %v498
      %v1376 = vpop.f32.mrb[0].mxu0
      %v1377 = vadd.f32 0.0, %v1376
      %v1378 = vpop.f32.mrb[0].mxu0
      %v1379 = vadd.f32 0.0, %v1378
      %v1380 = vpop.f32.mrb[0].mxu0
      %v1381 = vadd.f32 0.0, %v1380
      %v1382 = vpop.f32.mrb[0].mxu0
      %v1383 = vadd.f32 0.0, %v1382
      %1384 = vmatprep.mubr.bf16.mxu0 0
      %1385 = vmatmul.mubr.bf16.gmra.mrb[0].mxu0 %v499
      %v1386 = vpop.f32.mrb[0].mxu0
      %v1387 = vadd.f32 0.0, %v1386
      %v1388 = vpop.f32.mrb[0].mxu0
      %v1389 = vadd.f32 0.0, %v1388
      %v1390 = vpop.f32.mrb[0].mxu0
      %v1391 = vadd.f32 0.0, %v1390
      %v1392 = vpop.f32.mrb[0].mxu0
      %v1393 = vadd.f32 0.0, %v1392
      %1394 = vmatprep.mubr.bf16.mxu0 0
      %1395 = vmatmul.mubr.bf16.gmra.mrb[0].mxu0 %v500
      %v1396 = vpop.f32.mrb[0].mxu0
      %v1397 = vadd.f32 0.0, %v1396
      %v1398 = vpop.f32.mrb[0].mxu0
      %v1399 = vadd.f32 0.0, %v1398
      %v1400 = vpop.f32.mrb[0].mxu0
      %v1401 = vadd.f32 0.0, %v1400
      %v1402 = vpop.f32.mrb[0].mxu0
      %v1403 = vadd.f32 0.0, %v1402
      %1404 = vmatprep.mubr.bf16.mxu0 0
      %1405 = vmatmul.mubr.bf16.gmra.mrb[0].mxu0 %v501
      %v1406 = vpop.f32.mrb[0].mxu0
      %v1407 = vadd.f32 0.0, %v1406
      %v1408 = vpop.f32.mrb[0].mxu0
      %v1409 = vadd.f32 0.0, %v1408
      %v1410 = vpop.f32.mrb[0].mxu0
      %v1411 = vadd.f32 0.0, %v1410
      %v1412 = vpop.f32.mrb[0].mxu0
      %v1413 = vadd.f32 0.0, %v1412
      %1414 = vmatprep.mubr.bf16.mxu0 0
      %1415 = vmatmul.mubr.bf16.gmra.mrb[0].mxu0 %v502
      %v1416 = vpop.f32.mrb[0].mxu0
      %v1417 = vadd.f32 0.0, %v1416
      %v1418 = vpop.f32.mrb[0].mxu0
      %v1419 = vadd.f32 0.0, %v1418
      %v1420 = vpop.f32.mrb[0].mxu0
      %v1421 = vadd.f32 0.0, %v1420
      %v1422 = vpop.f32.mrb[0].mxu0
      %v1423 = vadd.f32 0.0, %v1422
      %1424 = vmatprep.mubr.bf16.mxu0 0
      %1425 = vmatmul.mubr.bf16.gmra.mrb[0].mxu0 %v503
      %v1426 = vpop.f32.mrb[0].mxu0
      %v1427 = vadd.f32 0.0, %v1426
      %v1428 = vpop.f32.mrb[0].mxu0
      %v1429 = vadd.f32 0.0, %v1428
      %v1430 = vpop.f32.mrb[0].mxu0
      %v1431 = vadd.f32 0.0, %v1430
      %v1432 = vpop.f32.mrb[0].mxu0
      %v1433 = vadd.f32 0.0, %v1432
      %1434 = vdwg.mxu0
      %v1451 = vunpack.c.l.b16 %v1210
      %v1452 = vunpack.c.h.b16 %v1210
      %v1453 = vunpack.c.l.b16 %v1211
      %v1454 = vunpack.c.h.b16 %v1211
      %v1455 = vunpack.c.l.b16 %v1212
      %v1456 = vunpack.c.h.b16 %v1212
      %v1457 = vunpack.c.l.b16 %v1213
      %v1458 = vunpack.c.h.b16 %v1213
      %v1459 = vunpack.c.l.b16 %v1214
      %v1460 = vunpack.c.h.b16 %v1214
      %v1461 = vunpack.c.l.b16 %v1215
      %v1462 = vunpack.c.h.b16 %v1215
      %v1463 = vunpack.c.l.b16 %v1216
      %v1464 = vunpack.c.h.b16 %v1216
      %v1465 = vunpack.c.l.b16 %v1217
      %v1466 = vunpack.c.h.b16 %v1217
      %v1467 = vunpack.c.l.b16 %v1218
      %v1468 = vunpack.c.h.b16 %v1218
      %v1469 = vunpack.c.l.b16 %v1219
      %v1470 = vunpack.c.h.b16 %v1219
      %v1471 = vunpack.c.l.b16 %v1220
      %v1472 = vunpack.c.h.b16 %v1220
      %v1473 = vunpack.c.l.b16 %v1221
      %v1474 = vunpack.c.h.b16 %v1221
      %v1475 = vunpack.c.l.b16 %v1222
      %v1476 = vunpack.c.h.b16 %v1222
      %v1477 = vunpack.c.l.b16 %v1223
      %v1478 = vunpack.c.h.b16 %v1223
      %v1479 = vunpack.c.l.b16 %v1224
      %v1480 = vunpack.c.h.b16 %v1224
      %v1481 = vunpack.c.l.b16 %v1225
      %v1482 = vunpack.c.h.b16 %v1225
      %v1483 = vpack.c.b16 %v1453, %v1451
      %v1484 = vpack.c.b16 %v1454, %v1452
      %v1485 = vpack.c.b16 %v1457, %v1455
      %v1486 = vpack.c.b16 %v1458, %v1456
      %v1487 = vpack.c.b16 %v1461, %v1459
      %v1488 = vpack.c.b16 %v1462, %v1460
      %v1489 = vpack.c.b16 %v1465, %v1463
      %v1490 = vpack.c.b16 %v1466, %v1464
      %v1491 = vpack.c.b16 %v1469, %v1467
      %v1492 = vpack.c.b16 %v1470, %v1468
      %v1493 = vpack.c.b16 %v1473, %v1471
      %v1494 = vpack.c.b16 %v1474, %v1472
      %v1495 = vpack.c.b16 %v1477, %v1475
      %v1496 = vpack.c.b16 %v1478, %v1476
      %v1497 = vpack.c.b16 %v1481, %v1479
      %v1498 = vpack.c.b16 %v1482, %v1480
      %1515 = vmatprep.subr.bf16.mxu0 %v1484
      %1516 = vmatpush1.bf16.msra.mxu0 %v1483
      %1517 = vmatprep.subr.bf16.mxu0 %v1486
      %1518 = vmatpush1.bf16.msra.mxu0 %v1485
      %1519 = vmatprep.subr.bf16.mxu0 %v1488
      %1520 = vmatpush1.bf16.msra.mxu0 %v1487
      %1521 = vmatprep.subr.bf16.mxu0 %v1490
      %1522 = vmatpush1.bf16.msra.mxu0 %v1489
      %1523 = vmatprep.subr.bf16.mxu0 %v1492
      %1524 = vmatpush1.bf16.msra.mxu0 %v1491
      %1525 = vmatprep.subr.bf16.mxu0 %v1494
      %1526 = vmatpush1.bf16.msra.mxu0 %v1493
      %1527 = vmatprep.subr.bf16.mxu0 %v1496
      %1528 = vmatpush1.bf16.msra.mxu0 %v1495
      %1529 = vmatprep.subr.bf16.mxu0 %v1498
      %1530 = vmatpush1.bf16.msra.mxu0 %v1497
      %1531 = vmatprep.subr.bf16.mxu0 0
      %1532 = vmatpush1.bf16.msra.mxu0 0
      %1533 = vmatprep.subr.bf16.mxu0 0
      %1534 = vmatpush1.bf16.msra.mxu0 0
      %1535 = vmatprep.subr.bf16.mxu0 0
      %1536 = vmatpush1.bf16.msra.mxu0 0
      %1537 = vmatprep.subr.bf16.mxu0 0
      %1538 = vmatpush1.bf16.msra.mxu0 0
      %1539 = vmatprep.subr.bf16.mxu0 0
      %1540 = vmatpush1.bf16.msra.mxu0 0
      %1541 = vmatprep.subr.bf16.mxu0 0
      %1542 = vmatpush1.bf16.msra.mxu0 0
      %1543 = vmatprep.subr.bf16.mxu0 0
      %1544 = vmatpush1.bf16.msra.mxu0 0
      %1545 = vmatprep.subr.bf16.mxu0 0
      %1546 = vmatpush1.bf16.msra.mxu0 0
      %1547 = vmatprep.mubr.bf16.mxu0 0
      %1548 = vmatmul.mubr.bf16.gmra.mrb[0].mxu0 %v408
      %v1549 = vpop.f32.mrb[0].mxu0
      %v1550 = vadd.f32 %v1357, %v1549
      %v1551 = vpop.f32.mrb[0].mxu0
      %v1552 = vadd.f32 %v1359, %v1551
      %v1553 = vpop.f32.mrb[0].mxu0
      %v1554 = vadd.f32 %v1361, %v1553
      %v1555 = vpop.f32.mrb[0].mxu0
      %v1556 = vadd.f32 %v1363, %v1555
      %1557 = vmatprep.mubr.bf16.mxu0 0
      %1558 = vmatmul.mubr.bf16.gmra.mrb[0].mxu0 %v409
      %v1559 = vpop.f32.mrb[0].mxu0
      %v1560 = vadd.f32 %v1367, %v1559
      %v1561 = vpop.f32.mrb[0].mxu0
      %v1562 = vadd.f32 %v1369, %v1561
      %v1563 = vpop.f32.mrb[0].mxu0
      %v1564 = vadd.f32 %v1371, %v1563
      %v1565 = vpop.f32.mrb[0].mxu0
      %v1566 = vadd.f32 %v1373, %v1565
      %1567 = vmatprep.mubr.bf16.mxu0 0
      %1568 = vmatmul.mubr.bf16.gmra.mrb[0].mxu0 %v410
      %v1569 = vpop.f32.mrb[0].mxu0
      %v1570 = vadd.f32 %v1377, %v1569
      %v1571 = vpop.f32.mrb[0].mxu0
      %v1572 = vadd.f32 %v1379, %v1571
      %v1573 = vpop.f32.mrb[0].mxu0
      %v1574 = vadd.f32 %v1381, %v1573
      %v1575 = vpop.f32.mrb[0].mxu0
      %v1576 = vadd.f32 %v1383, %v1575
      %1577 = vmatprep.mubr.bf16.mxu0 0
      %1578 = vmatmul.mubr.bf16.gmra.mrb[0].mxu0 %v411
      %v1579 = vpop.f32.mrb[0].mxu0
      %v1580 = vadd.f32 %v1387, %v1579
      %v1581 = vpop.f32.mrb[0].mxu0
      %v1582 = vadd.f32 %v1389, %v1581
      %v1583 = vpop.f32.mrb[0].mxu0
      %v1584 = vadd.f32 %v1391, %v1583
      %v1585 = vpop.f32.mrb[0].mxu0
      %v1586 = vadd.f32 %v1393, %v1585
      %1587 = vmatprep.mubr.bf16.mxu0 0
      %1588 = vmatmul.mubr.bf16.gmra.mrb[0].mxu0 %v412
      %v1589 = vpop.f32.mrb[0].mxu0
      %v1590 = vadd.f32 %v1397, %v1589
      %v1591 = vpop.f32.mrb[0].mxu0
      %v1592 = vadd.f32 %v1399, %v1591
      %v1593 = vpop.f32.mrb[0].mxu0
      %v1594 = vadd.f32 %v1401, %v1593
      %v1595 = vpop.f32.mrb[0].mxu0
      %v1596 = vadd.f32 %v1403, %v1595
      %1597 = vmatprep.mubr.bf16.mxu0 0
      %1598 = vmatmul.mubr.bf16.gmra.mrb[0].mxu0 %v413
      %v1599 = vpop.f32.mrb[0].mxu0
      %v1600 = vadd.f32 %v1407, %v1599
      %v1601 = vpop.f32.mrb[0].mxu0
      %v1602 = vadd.f32 %v1409, %v1601
      %v1603 = vpop.f32.mrb[0].mxu0
      %v1604 = vadd.f32 %v1411, %v1603
      %v1605 = vpop.f32.mrb[0].mxu0
      %v1606 = vadd.f32 %v1413, %v1605
      %1607 = vmatprep.mubr.bf16.mxu0 0
      %1608 = vmatmul.mubr.bf16.gmra.mrb[0].mxu0 %v414
      %v1609 = vpop.f32.mrb[0].mxu0
      %v1610 = vadd.f32 %v1417, %v1609
      %v1611 = vpop.f32.mrb[0].mxu0
      %v1612 = vadd.f32 %v1419, %v1611
      %v1613 = vpop.f32.mrb[0].mxu0
      %v1614 = vadd.f32 %v1421, %v1613
      %v1615 = vpop.f32.mrb[0].mxu0
      %v1616 = vadd.f32 %v1423, %v1615
      %1617 = vmatprep.mubr.bf16.mxu0 0
      %1618 = vmatmul.mubr.bf16.gmra.mrb[0].mxu0 %v415
      %v1619 = vpop.f32.mrb[0].mxu0
      %v1620 = vadd.f32 %v1427, %v1619
      %v1621 = vpop.f32.mrb[0].mxu0
      %v1622 = vadd.f32 %v1429, %v1621
      %v1623 = vpop.f32.mrb[0].mxu0
      %v1624 = vadd.f32 %v1431, %v1623
      %v1625 = vpop.f32.mrb[0].mxu0
      %v1626 = vadd.f32 %v1433, %v1625
      %1627 = vdwg.mxu0
      %v1628 = vld [vmem:[%s5 + $0x2] sm:$0x3]
      %v1630 = vlaneseq
      %v1631 = vshrl.u32 %v1630, 7
      %v1632 = vsub.s32 0, %v1631
      %v1633 = vrot.slane %v1628, %v1632
      %v1634 = vlaneseq
      %v1635 = vshrl.u32 %v1634, 7
      %v1636 = vsub.s32 1, %v1635
      %v1637 = vrot.slane %v1628, %v1636
      %v1640 = vadd.f32 %v1550, %v1633
      %v1641 = vadd.f32 %v1552, %v1637
      %v1642 = vadd.f32 %v1554, %v1633
      %v1643 = vadd.f32 %v1556, %v1637
      %v1644 = vadd.f32 %v1560, %v1633
      %v1645 = vadd.f32 %v1562, %v1637
      %v1646 = vadd.f32 %v1564, %v1633
      %v1647 = vadd.f32 %v1566, %v1637
      %v1648 = vadd.f32 %v1570, %v1633
      %v1649 = vadd.f32 %v1572, %v1637
      %v1650 = vadd.f32 %v1574, %v1633
      %v1651 = vadd.f32 %v1576, %v1637
      %v1652 = vadd.f32 %v1580, %v1633
      %v1653 = vadd.f32 %v1582, %v1637
      %v1654 = vadd.f32 %v1584, %v1633
      %v1655 = vadd.f32 %v1586, %v1637
      %v1656 = vadd.f32 %v1590, %v1633
      %v1657 = vadd.f32 %v1592, %v1637
      %v1658 = vadd.f32 %v1594, %v1633
      %v1659 = vadd.f32 %v1596, %v1637
      %v1660 = vadd.f32 %v1600, %v1633
      %v1661 = vadd.f32 %v1602, %v1637
      %v1662 = vadd.f32 %v1604, %v1633
      %v1663 = vadd.f32 %v1606, %v1637
      %v1664 = vadd.f32 %v1610, %v1633
      %v1665 = vadd.f32 %v1612, %v1637
      %v1666 = vadd.f32 %v1614, %v1633
      %v1667 = vadd.f32 %v1616, %v1637
      %v1668 = vadd.f32 %v1620, %v1633
      %v1669 = vadd.f32 %v1622, %v1637
      %v1670 = vadd.f32 %v1624, %v1633
      %v1671 = vadd.f32 %v1626, %v1637
      %vm1672 = vcmp.gt.f32.partialorder %v1640, 0.0
      %vm1673 = vcmp.gt.f32.partialorder %v1641, 0.0
      %vm1674 = vcmp.gt.f32.partialorder %v1642, 0.0
      %vm1675 = vcmp.gt.f32.partialorder %v1643, 0.0
      %vm1676 = vcmp.gt.f32.partialorder %v1644, 0.0
      %vm1677 = vcmp.gt.f32.partialorder %v1645, 0.0
      %vm1678 = vcmp.gt.f32.partialorder %v1646, 0.0
      %vm1679 = vcmp.gt.f32.partialorder %v1647, 0.0
      %vm1680 = vcmp.gt.f32.partialorder %v1648, 0.0
      %vm1681 = vcmp.gt.f32.partialorder %v1649, 0.0
      %vm1682 = vcmp.gt.f32.partialorder %v1650, 0.0
      %vm1683 = vcmp.gt.f32.partialorder %v1651, 0.0
      %vm1684 = vcmp.gt.f32.partialorder %v1652, 0.0
      %vm1685 = vcmp.gt.f32.partialorder %v1653, 0.0
      %vm1686 = vcmp.gt.f32.partialorder %v1654, 0.0
      %vm1687 = vcmp.gt.f32.partialorder %v1655, 0.0
      %vm1688 = vcmp.gt.f32.partialorder %v1656, 0.0
      %vm1689 = vcmp.gt.f32.partialorder %v1657, 0.0
      %vm1690 = vcmp.gt.f32.partialorder %v1658, 0.0
      %vm1691 = vcmp.gt.f32.partialorder %v1659, 0.0
      %vm1692 = vcmp.gt.f32.partialorder %v1660, 0.0
      %vm1693 = vcmp.gt.f32.partialorder %v1661, 0.0
      %vm1694 = vcmp.gt.f32.partialorder %v1662, 0.0
      %vm1695 = vcmp.gt.f32.partialorder %v1663, 0.0
      %vm1696 = vcmp.gt.f32.partialorder %v1664, 0.0
      %vm1697 = vcmp.gt.f32.partialorder %v1665, 0.0
      %vm1698 = vcmp.gt.f32.partialorder %v1666, 0.0
      %vm1699 = vcmp.gt.f32.partialorder %v1667, 0.0
      %vm1700 = vcmp.gt.f32.partialorder %v1668, 0.0
      %vm1701 = vcmp.gt.f32.partialorder %v1669, 0.0
      %vm1702 = vcmp.gt.f32.partialorder %v1670, 0.0
      %vm1703 = vcmp.gt.f32.partialorder %v1671, 0.0
      %v1704 = vmin.f32 %v1640, 0.0
      %v1705 = vmin.f32 %v1641, 0.0
      %v1706 = vmin.f32 %v1642, 0.0
      %v1707 = vmin.f32 %v1643, 0.0
      %v1708 = vmin.f32 %v1644, 0.0
      %v1709 = vmin.f32 %v1645, 0.0
      %v1710 = vmin.f32 %v1646, 0.0
      %v1711 = vmin.f32 %v1647, 0.0
      %v1712 = vmin.f32 %v1648, 0.0
      %v1713 = vmin.f32 %v1649, 0.0
      %v1714 = vmin.f32 %v1650, 0.0
      %v1715 = vmin.f32 %v1651, 0.0
      %v1716 = vmin.f32 %v1652, 0.0
      %v1717 = vmin.f32 %v1653, 0.0
      %v1718 = vmin.f32 %v1654, 0.0
      %v1719 = vmin.f32 %v1655, 0.0
      %v1720 = vmin.f32 %v1656, 0.0
      %v1721 = vmin.f32 %v1657, 0.0
      %v1722 = vmin.f32 %v1658, 0.0
      %v1723 = vmin.f32 %v1659, 0.0
      %v1724 = vmin.f32 %v1660, 0.0
      %v1725 = vmin.f32 %v1661, 0.0
      %v1726 = vmin.f32 %v1662, 0.0
      %v1727 = vmin.f32 %v1663, 0.0
      %v1728 = vmin.f32 %v1664, 0.0
      %v1729 = vmin.f32 %v1665, 0.0
      %v1730 = vmin.f32 %v1666, 0.0
      %v1731 = vmin.f32 %v1667, 0.0
      %v1732 = vmin.f32 %v1668, 0.0
      %v1733 = vmin.f32 %v1669, 0.0
      %v1734 = vmin.f32 %v1670, 0.0
      %v1735 = vmin.f32 %v1671, 0.0
      %v1736 = vmul.f32 %v1704, 1.442695
      %v1737 = vpow.pop %v1736
      %v1738 = vmul.f32 %v1705, 1.442695
      %v1739 = vpow.pop %v1738
      %v1740 = vmul.f32 %v1706, 1.442695
      %v1741 = vpow.pop %v1740
      %v1742 = vmul.f32 %v1707, 1.442695
      %v1743 = vpow.pop %v1742
      %v1744 = vmul.f32 %v1708, 1.442695
      %v1745 = vpow.pop %v1744
      %v1746 = vmul.f32 %v1709, 1.442695
      %v1747 = vpow.pop %v1746
      %v1748 = vmul.f32 %v1710, 1.442695
      %v1749 = vpow.pop %v1748
      %v1750 = vmul.f32 %v1711, 1.442695
      %v1751 = vpow.pop %v1750
      %v1752 = vmul.f32 %v1712, 1.442695
      %v1753 = vpow.pop %v1752
      %v1754 = vmul.f32 %v1713, 1.442695
      %v1755 = vpow.pop %v1754
      %v1756 = vmul.f32 %v1714, 1.442695
      %v1757 = vpow.pop %v1756
      %v1758 = vmul.f32 %v1715, 1.442695
      %v1759 = vpow.pop %v1758
      %v1760 = vmul.f32 %v1716, 1.442695
      %v1761 = vpow.pop %v1760
      %v1762 = vmul.f32 %v1717, 1.442695
      %v1763 = vpow.pop %v1762
      %v1764 = vmul.f32 %v1718, 1.442695
      %v1765 = vpow.pop %v1764
      %v1766 = vmul.f32 %v1719, 1.442695
      %v1767 = vpow.pop %v1766
      %v1768 = vmul.f32 %v1720, 1.442695
      %v1769 = vpow.pop %v1768
      %v1770 = vmul.f32 %v1721, 1.442695
      %v1771 = vpow.pop %v1770
      %v1772 = vmul.f32 %v1722, 1.442695
      %v1773 = vpow.pop %v1772
      %v1774 = vmul.f32 %v1723, 1.442695
      %v1775 = vpow.pop %v1774
      %v1776 = vmul.f32 %v1724, 1.442695
      %v1777 = vpow.pop %v1776
      %v1778 = vmul.f32 %v1725, 1.442695
      %v1779 = vpow.pop %v1778
      %v1780 = vmul.f32 %v1726, 1.442695
      %v1781 = vpow.pop %v1780
      %v1782 = vmul.f32 %v1727, 1.442695
      %v1783 = vpow.pop %v1782
      %v1784 = vmul.f32 %v1728, 1.442695
      %v1785 = vpow.pop %v1784
      %v1786 = vmul.f32 %v1729, 1.442695
      %v1787 = vpow.pop %v1786
      %v1788 = vmul.f32 %v1730, 1.442695
      %v1789 = vpow.pop %v1788
      %v1790 = vmul.f32 %v1731, 1.442695
      %v1791 = vpow.pop %v1790
      %v1792 = vmul.f32 %v1732, 1.442695
      %v1793 = vpow.pop %v1792
      %v1794 = vmul.f32 %v1733, 1.442695
      %v1795 = vpow.pop %v1794
      %v1796 = vmul.f32 %v1734, 1.442695
      %v1797 = vpow.pop %v1796
      %v1798 = vmul.f32 %v1735, 1.442695
      %v1799 = vpow.pop %v1798
      %v1800 = vsub.f32 %v1737, 1.0
      %v1801 = vsub.f32 %v1739, 1.0
      %v1802 = vsub.f32 %v1741, 1.0
      %v1803 = vsub.f32 %v1743, 1.0
      %v1804 = vsub.f32 %v1745, 1.0
      %v1805 = vsub.f32 %v1747, 1.0
      %v1806 = vsub.f32 %v1749, 1.0
      %v1807 = vsub.f32 %v1751, 1.0
      %v1808 = vsub.f32 %v1753, 1.0
      %v1809 = vsub.f32 %v1755, 1.0
      %v1810 = vsub.f32 %v1757, 1.0
      %v1811 = vsub.f32 %v1759, 1.0
      %v1812 = vsub.f32 %v1761, 1.0
      %v1813 = vsub.f32 %v1763, 1.0
      %v1814 = vsub.f32 %v1765, 1.0
      %v1815 = vsub.f32 %v1767, 1.0
      %v1816 = vsub.f32 %v1769, 1.0
      %v1817 = vsub.f32 %v1771, 1.0
      %v1818 = vsub.f32 %v1773, 1.0
      %v1819 = vsub.f32 %v1775, 1.0
      %v1820 = vsub.f32 %v1777, 1.0
      %v1821 = vsub.f32 %v1779, 1.0
      %v1822 = vsub.f32 %v1781, 1.0
      %v1823 = vsub.f32 %v1783, 1.0
      %v1824 = vsub.f32 %v1785, 1.0
      %v1825 = vsub.f32 %v1787, 1.0
      %v1826 = vsub.f32 %v1789, 1.0
      %v1827 = vsub.f32 %v1791, 1.0
      %v1828 = vsub.f32 %v1793, 1.0
      %v1829 = vsub.f32 %v1795, 1.0
      %v1830 = vsub.f32 %v1797, 1.0
      %v1831 = vsub.f32 %v1799, 1.0
      %v1832 = vsel %vm1672, %v1640, %v1800
      %v1833 = vsel %vm1673, %v1641, %v1801
      %v1834 = vsel %vm1674, %v1642, %v1802
      %v1835 = vsel %vm1675, %v1643, %v1803
      %v1836 = vsel %vm1676, %v1644, %v1804
      %v1837 = vsel %vm1677, %v1645, %v1805
      %v1838 = vsel %vm1678, %v1646, %v1806
      %v1839 = vsel %vm1679, %v1647, %v1807
      %v1840 = vsel %vm1680, %v1648, %v1808
      %v1841 = vsel %vm1681, %v1649, %v1809
      %v1842 = vsel %vm1682, %v1650, %v1810
      %v1843 = vsel %vm1683, %v1651, %v1811
      %v1844 = vsel %vm1684, %v1652, %v1812
      %v1845 = vsel %vm1685, %v1653, %v1813
      %v1846 = vsel %vm1686, %v1654, %v1814
      %v1847 = vsel %vm1687, %v1655, %v1815
      %v1848 = vsel %vm1688, %v1656, %v1816
      %v1849 = vsel %vm1689, %v1657, %v1817
      %v1850 = vsel %vm1690, %v1658, %v1818
      %v1851 = vsel %vm1691, %v1659, %v1819
      %v1852 = vsel %vm1692, %v1660, %v1820
      %v1853 = vsel %vm1693, %v1661, %v1821
      %v1854 = vsel %vm1694, %v1662, %v1822
      %v1855 = vsel %vm1695, %v1663, %v1823
      %v1856 = vsel %vm1696, %v1664, %v1824
      %v1857 = vsel %vm1697, %v1665, %v1825
      %v1858 = vsel %vm1698, %v1666, %v1826
      %v1859 = vsel %vm1699, %v1667, %v1827
      %v1860 = vsel %vm1700, %v1668, %v1828
      %v1861 = vsel %vm1701, %v1669, %v1829
      %v1862 = vsel %vm1702, %v1670, %v1830
      %v1863 = vsel %vm1703, %v1671, %v1831
      %v1864 = vld [vmem:[%s6 + $0x2] sm:$0x3]
      %v1866 = vlaneseq
      %v1867 = vshrl.u32 %v1866, 7
      %v1868 = vsub.s32 0, %v1867
      %v1869 = vrot.slane %v1864, %v1868
      %v1870 = vlaneseq
      %v1871 = vshrl.u32 %v1870, 7
      %v1872 = vsub.s32 1, %v1871
      %v1873 = vrot.slane %v1864, %v1872
      %v1876 = vmul.f32 %v1832, %v1869
      %v1877 = vmul.f32 %v1833, %v1873
      %v1878 = vmul.f32 %v1834, %v1869
      %v1879 = vmul.f32 %v1835, %v1873
      %v1880 = vmul.f32 %v1836, %v1869
      %v1881 = vmul.f32 %v1837, %v1873
      %v1882 = vmul.f32 %v1838, %v1869
      %v1883 = vmul.f32 %v1839, %v1873
      %v1884 = vmul.f32 %v1840, %v1869
      %v1885 = vmul.f32 %v1841, %v1873
      %v1886 = vmul.f32 %v1842, %v1869
      %v1887 = vmul.f32 %v1843, %v1873
      %v1888 = vmul.f32 %v1844, %v1869
      %v1889 = vmul.f32 %v1845, %v1873
      %v1890 = vmul.f32 %v1846, %v1869
      %v1891 = vmul.f32 %v1847, %v1873
      %v1892 = vmul.f32 %v1848, %v1869
      %v1893 = vmul.f32 %v1849, %v1873
      %v1894 = vmul.f32 %v1850, %v1869
      %v1895 = vmul.f32 %v1851, %v1873
      %v1896 = vmul.f32 %v1852, %v1869
      %v1897 = vmul.f32 %v1853, %v1873
      %v1898 = vmul.f32 %v1854, %v1869
      %v1899 = vmul.f32 %v1855, %v1873
      %v1900 = vmul.f32 %v1856, %v1869
      %v1901 = vmul.f32 %v1857, %v1873
      %v1902 = vmul.f32 %v1858, %v1869
      %v1903 = vmul.f32 %v1859, %v1873
      %v1904 = vmul.f32 %v1860, %v1869
      %v1905 = vmul.f32 %v1861, %v1873
      %v1906 = vmul.f32 %v1862, %v1869
      %v1907 = vmul.f32 %v1863, %v1873
      %v1908 = vadd.f32 %v1194, %v1876
      %v1909 = vadd.f32 %v1195, %v1878
      %v1910 = vadd.f32 %v1196, %v1880
      %v1911 = vadd.f32 %v1197, %v1882
      %v1912 = vadd.f32 %v1198, %v1884
      %v1913 = vadd.f32 %v1199, %v1886
      %v1914 = vadd.f32 %v1200, %v1888
      %v1915 = vadd.f32 %v1201, %v1890
      %v1916 = vadd.f32 %v1202, %v1892
      %v1917 = vadd.f32 %v1203, %v1894
      %v1918 = vadd.f32 %v1204, %v1896
      %v1919 = vadd.f32 %v1205, %v1898
      %v1920 = vadd.f32 %v1206, %v1900
      %v1921 = vadd.f32 %v1207, %v1902
      %v1922 = vadd.f32 %v1208, %v1904
      %v1923 = vadd.f32 %v1209, %v1906
      %v1924 = vadd.f32 %v1908, %v1877
      %v1925 = vadd.f32 %v1909, %v1879
      %v1926 = vadd.f32 %v1910, %v1881
      %v1927 = vadd.f32 %v1911, %v1883
      %v1928 = vadd.f32 %v1912, %v1885
      %v1929 = vadd.f32 %v1913, %v1887
      %v1930 = vadd.f32 %v1914, %v1889
      %v1931 = vadd.f32 %v1915, %v1891
      %v1932 = vadd.f32 %v1916, %v1893
      %v1933 = vadd.f32 %v1917, %v1895
      %v1934 = vadd.f32 %v1918, %v1897
      %v1935 = vadd.f32 %v1919, %v1899
      %v1936 = vadd.f32 %v1920, %v1901
      %v1937 = vadd.f32 %v1921, %v1903
      %v1938 = vadd.f32 %v1922, %v1905
      %v1939 = vadd.f32 %v1923, %v1907
      %v1940 = vld [vmem:[#allocation9 + $0x10] sm:$0xf]
      %v1941 = vld [vmem:[#allocation9 + $0x24] sm:$0xf]
      %v1942 = vld [vmem:[#allocation9 + $0x38] sm:$0xf]
      %v1943 = vld [vmem:[#allocation9 + $0x4c] sm:$0xf]
      %v1944 = vld [vmem:[#allocation9 + $0x60] sm:$0xf]
      %v1945 = vld [vmem:[#allocation9 + $0x74] sm:$0xf]
      %v1946 = vld [vmem:[#allocation9 + $0x88] sm:$0xf]
      %v1947 = vld [vmem:[#allocation9 + $0x9c] sm:$0xf]
      %v1948 = vld [vmem:[#allocation9 + $0xb0] sm:$0xf]
      %v1949 = vld [vmem:[#allocation9 + $0xc4] sm:$0xf]
      %v1950 = vld [vmem:[#allocation9 + $0xd8] sm:$0xf]
      %v1951 = vld [vmem:[#allocation9 + $0xec] sm:$0xf]
      %v1952 = vld [vmem:[#allocation9 + $0x100] sm:$0xf]
      %v1953 = vld [vmem:[#allocation9 + $0x114] sm:$0xf]
      %v1954 = vld [vmem:[#allocation9 + $0x128] sm:$0xf]
      %v1955 = vld [vmem:[#allocation9 + $0x13c] sm:$0xf]
      %v1956 = vld [vmem:[#allocation11 + $0x10] sm:$0xf]
      %v1957 = vld [vmem:[#allocation11 + $0x24] sm:$0xf]
      %v1958 = vld [vmem:[#allocation11 + $0x38] sm:$0xf]
      %v1959 = vld [vmem:[#allocation11 + $0x4c] sm:$0xf]
      %v1960 = vld [vmem:[#allocation11 + $0x60] sm:$0xf]
      %v1961 = vld [vmem:[#allocation11 + $0x74] sm:$0xf]
      %v1962 = vld [vmem:[#allocation11 + $0x88] sm:$0xf]
      %v1963 = vld [vmem:[#allocation11 + $0x9c] sm:$0xf]
      %v1964 = vld [vmem:[#allocation11 + $0xb0] sm:$0xf]
      %v1965 = vld [vmem:[#allocation11 + $0xc4] sm:$0xf]
      %v1966 = vld [vmem:[#allocation11 + $0xd8] sm:$0xf]
      %v1967 = vld [vmem:[#allocation11 + $0xec] sm:$0xf]
      %v1968 = vld [vmem:[#allocation11 + $0x100] sm:$0xf]
      %v1969 = vld [vmem:[#allocation11 + $0x114] sm:$0xf]
      %v1970 = vld [vmem:[#allocation11 + $0x128] sm:$0xf]
      %v1971 = vld [vmem:[#allocation11 + $0x13c] sm:$0xf]
      %v1988 = vunpack.c.l.b16 %v1956
      %v1989 = vunpack.c.l.b16 %v1957
      %v1990 = vunpack.c.l.b16 %v1958
      %v1991 = vunpack.c.l.b16 %v1959
      %v1992 = vunpack.c.l.b16 %v1960
      %v1993 = vunpack.c.l.b16 %v1961
      %v1994 = vunpack.c.l.b16 %v1962
      %v1995 = vunpack.c.l.b16 %v1963
      %v1996 = vunpack.c.l.b16 %v1964
      %v1997 = vunpack.c.l.b16 %v1965
      %v1998 = vunpack.c.l.b16 %v1966
      %v1999 = vunpack.c.l.b16 %v1967
      %v2000 = vunpack.c.l.b16 %v1968
      %v2001 = vunpack.c.l.b16 %v1969
      %v2002 = vunpack.c.l.b16 %v1970
      %v2003 = vunpack.c.l.b16 %v1971
      %v2004 = vpack.c.b16 %v1989, %v1988
      %v2005 = vpack.c.b16 %v1991, %v1990
      %v2006 = vpack.c.b16 %v1993, %v1992
      %v2007 = vpack.c.b16 %v1995, %v1994
      %v2008 = vpack.c.b16 %v1997, %v1996
      %v2009 = vpack.c.b16 %v1999, %v1998
      %v2010 = vpack.c.b16 %v2001, %v2000
      %v2011 = vpack.c.b16 %v2003, %v2002
      %2020 = vmatprep.subr.bf16.mxu0 0
      %2021 = vmatpush1.bf16.msra.mxu0 %v2004
      %2022 = vmatprep.subr.bf16.mxu0 0
      %2023 = vmatpush1.bf16.msra.mxu0 %v2005
      %2024 = vmatprep.subr.bf16.mxu0 0
      %2025 = vmatpush1.bf16.msra.mxu0 %v2006
      %2026 = vmatprep.subr.bf16.mxu0 0
      %2027 = vmatpush1.bf16.msra.mxu0 %v2007
      %2028 = vmatprep.subr.bf16.mxu0 0
      %2029 = vmatpush1.bf16.msra.mxu0 %v2008
      %2030 = vmatprep.subr.bf16.mxu0 0
      %2031 = vmatpush1.bf16.msra.mxu0 %v2009
      %2032 = vmatprep.subr.bf16.mxu0 0
      %2033 = vmatpush1.bf16.msra.mxu0 %v2010
      %2034 = vmatprep.subr.bf16.mxu0 0
      %2035 = vmatpush1.bf16.msra.mxu0 %v2011
      %2036 = vmatprep.subr.bf16.mxu0 0
      %2037 = vmatpush1.bf16.msra.mxu0 0
      %2038 = vmatprep.subr.bf16.mxu0 0
      %2039 = vmatpush1.bf16.msra.mxu0 0
      %2040 = vmatprep.subr.bf16.mxu0 0
      %2041 = vmatpush1.bf16.msra.mxu0 0
      %2042 = vmatprep.subr.bf16.mxu0 0
      %2043 = vmatpush1.bf16.msra.mxu0 0
      %2044 = vmatprep.subr.bf16.mxu0 0
      %2045 = vmatpush1.bf16.msra.mxu0 0
      %2046 = vmatprep.subr.bf16.mxu0 0
      %2047 = vmatpush1.bf16.msra.mxu0 0
      %2048 = vmatprep.subr.bf16.mxu0 0
      %2049 = vmatpush1.bf16.msra.mxu0 0
      %2050 = vmatprep.subr.bf16.mxu0 0
      %2051 = vmatpush1.bf16.msra.mxu0 0
      %2052 = vmatprep.mubr.bf16.mxu0 0
      %2053 = vmatmul.mubr.bf16.gmra.mrb[0].mxu0 %v496
      %v2054 = vpop.f32.mrb[0].mxu0
      %v2055 = vadd.f32 0.0, %v2054
      %v2056 = vpop.f32.mrb[0].mxu0
      %v2057 = vpop.f32.mrb[0].mxu0
      %v2058 = vadd.f32 0.0, %v2057
      %v2059 = vpop.f32.mrb[0].mxu0
      %2060 = vmatprep.mubr.bf16.mxu0 0
      %2061 = vmatmul.mubr.bf16.gmra.mrb[0].mxu0 %v497
      %v2062 = vpop.f32.mrb[0].mxu0
      %v2063 = vadd.f32 0.0, %v2062
      %v2064 = vpop.f32.mrb[0].mxu0
      %v2065 = vpop.f32.mrb[0].mxu0
      %v2066 = vadd.f32 0.0, %v2065
      %v2067 = vpop.f32.mrb[0].mxu0
      %2068 = vmatprep.mubr.bf16.mxu0 0
      %2069 = vmatmul.mubr.bf16.gmra.mrb[0].mxu0 %v498
      %v2070 = vpop.f32.mrb[0].mxu0
      %v2071 = vadd.f32 0.0, %v2070
      %v2072 = vpop.f32.mrb[0].mxu0
      %v2073 = vpop.f32.mrb[0].mxu0
      %v2074 = vadd.f32 0.0, %v2073
      %v2075 = vpop.f32.mrb[0].mxu0
      %2076 = vmatprep.mubr.bf16.mxu0 0
      %2077 = vmatmul.mubr.bf16.gmra.mrb[0].mxu0 %v499
      %v2078 = vpop.f32.mrb[0].mxu0
      %v2079 = vadd.f32 0.0, %v2078
      %v2080 = vpop.f32.mrb[0].mxu0
      %v2081 = vpop.f32.mrb[0].mxu0
      %v2082 = vadd.f32 0.0, %v2081
      %v2083 = vpop.f32.mrb[0].mxu0
      %2084 = vmatprep.mubr.bf16.mxu0 0
      %2085 = vmatmul.mubr.bf16.gmra.mrb[0].mxu0 %v500
      %v2086 = vpop.f32.mrb[0].mxu0
      %v2087 = vadd.f32 0.0, %v2086
      %v2088 = vpop.f32.mrb[0].mxu0
      %v2089 = vpop.f32.mrb[0].mxu0
      %v2090 = vadd.f32 0.0, %v2089
      %v2091 = vpop.f32.mrb[0].mxu0
      %2092 = vmatprep.mubr.bf16.mxu0 0
      %2093 = vmatmul.mubr.bf16.gmra.mrb[0].mxu0 %v501
      %v2094 = vpop.f32.mrb[0].mxu0
      %v2095 = vadd.f32 0.0, %v2094
      %v2096 = vpop.f32.mrb[0].mxu0
      %v2097 = vpop.f32.mrb[0].mxu0
      %v2098 = vadd.f32 0.0, %v2097
      %v2099 = vpop.f32.mrb[0].mxu0
      %2100 = vmatprep.mubr.bf16.mxu0 0
      %2101 = vmatmul.mubr.bf16.gmra.mrb[0].mxu0 %v502
      %v2102 = vpop.f32.mrb[0].mxu0
      %v2103 = vadd.f32 0.0, %v2102
      %v2104 = vpop.f32.mrb[0].mxu0
      %v2105 = vpop.f32.mrb[0].mxu0
      %v2106 = vadd.f32 0.0, %v2105
      %v2107 = vpop.f32.mrb[0].mxu0
      %2108 = vmatprep.mubr.bf16.mxu0 0
      %2109 = vmatmul.mubr.bf16.gmra.mrb[0].mxu0 %v503
      %v2110 = vpop.f32.mrb[0].mxu0
      %v2111 = vadd.f32 0.0, %v2110
      %v2112 = vpop.f32.mrb[0].mxu0
      %v2113 = vpop.f32.mrb[0].mxu0
      %v2114 = vadd.f32 0.0, %v2113
      %v2115 = vpop.f32.mrb[0].mxu0
      %2116 = vdwg.mxu0
      %v2133 = vunpack.c.l.b16 %v1940
      %v2134 = vunpack.c.l.b16 %v1941
      %v2135 = vunpack.c.l.b16 %v1942
      %v2136 = vunpack.c.l.b16 %v1943
      %v2137 = vunpack.c.l.b16 %v1944
      %v2138 = vunpack.c.l.b16 %v1945
      %v2139 = vunpack.c.l.b16 %v1946
      %v2140 = vunpack.c.l.b16 %v1947
      %v2141 = vunpack.c.l.b16 %v1948
      %v2142 = vunpack.c.l.b16 %v1949
      %v2143 = vunpack.c.l.b16 %v1950
      %v2144 = vunpack.c.l.b16 %v1951
      %v2145 = vunpack.c.l.b16 %v1952
      %v2146 = vunpack.c.l.b16 %v1953
      %v2147 = vunpack.c.l.b16 %v1954
      %v2148 = vunpack.c.l.b16 %v1955
      %v2149 = vpack.c.b16 %v2134, %v2133
      %v2150 = vpack.c.b16 %v2136, %v2135
      %v2151 = vpack.c.b16 %v2138, %v2137
      %v2152 = vpack.c.b16 %v2140, %v2139
      %v2153 = vpack.c.b16 %v2142, %v2141
      %v2154 = vpack.c.b16 %v2144, %v2143
      %v2155 = vpack.c.b16 %v2146, %v2145
      %v2156 = vpack.c.b16 %v2148, %v2147
      %2165 = vmatprep.subr.bf16.mxu0 0
      %2166 = vmatpush1.bf16.msra.mxu0 %v2149
      %2167 = vmatprep.subr.bf16.mxu0 0
      %2168 = vmatpush1.bf16.msra.mxu0 %v2150
      %2169 = vmatprep.subr.bf16.mxu0 0
      %2170 = vmatpush1.bf16.msra.mxu0 %v2151
      %2171 = vmatprep.subr.bf16.mxu0 0
      %2172 = vmatpush1.bf16.msra.mxu0 %v2152
      %2173 = vmatprep.subr.bf16.mxu0 0
      %2174 = vmatpush1.bf16.msra.mxu0 %v2153
      %2175 = vmatprep.subr.bf16.mxu0 0
      %2176 = vmatpush1.bf16.msra.mxu0 %v2154
      %2177 = vmatprep.subr.bf16.mxu0 0
      %2178 = vmatpush1.bf16.msra.mxu0 %v2155
      %2179 = vmatprep.subr.bf16.mxu0 0
      %2180 = vmatpush1.bf16.msra.mxu0 %v2156
      %2181 = vmatprep.subr.bf16.mxu0 0
      %2182 = vmatpush1.bf16.msra.mxu0 0
      %2183 = vmatprep.subr.bf16.mxu0 0
      %2184 = vmatpush1.bf16.msra.mxu0 0
      %2185 = vmatprep.subr.bf16.mxu0 0
      %2186 = vmatpush1.bf16.msra.mxu0 0
      %2187 = vmatprep.subr.bf16.mxu0 0
      %2188 = vmatpush1.bf16.msra.mxu0 0
      %2189 = vmatprep.subr.bf16.mxu0 0
      %2190 = vmatpush1.bf16.msra.mxu0 0
      %2191 = vmatprep.subr.bf16.mxu0 0
      %2192 = vmatpush1.bf16.msra.mxu0 0
      %2193 = vmatprep.subr.bf16.mxu0 0
      %2194 = vmatpush1.bf16.msra.mxu0 0
      %2195 = vmatprep.subr.bf16.mxu0 0
      %2196 = vmatpush1.bf16.msra.mxu0 0
      %2197 = vmatprep.mubr.bf16.mxu0 0
      %2198 = vmatmul.mubr.bf16.gmra.mrb[0].mxu0 %v408
      %v2199 = vpop.f32.mrb[0].mxu0
      %v2200 = vadd.f32 %v2055, %v2199
      %v2201 = vpop.f32.mrb[0].mxu0
      %v2202 = vpop.f32.mrb[0].mxu0
      %v2203 = vadd.f32 %v2058, %v2202
      %v2204 = vpop.f32.mrb[0].mxu0
      %2205 = vmatprep.mubr.bf16.mxu0 0
      %2206 = vmatmul.mubr.bf16.gmra.mrb[0].mxu0 %v409
      %v2207 = vpop.f32.mrb[0].mxu0
      %v2208 = vadd.f32 %v2063, %v2207
      %v2209 = vpop.f32.mrb[0].mxu0
      %v2210 = vpop.f32.mrb[0].mxu0
      %v2211 = vadd.f32 %v2066, %v2210
      %v2212 = vpop.f32.mrb[0].mxu0
      %2213 = vmatprep.mubr.bf16.mxu0 0
      %2214 = vmatmul.mubr.bf16.gmra.mrb[0].mxu0 %v410
      %v2215 = vpop.f32.mrb[0].mxu0
      %v2216 = vadd.f32 %v2071, %v2215
      %v2217 = vpop.f32.mrb[0].mxu0
      %v2218 = vpop.f32.mrb[0].mxu0
      %v2219 = vadd.f32 %v2074, %v2218
      %v2220 = vpop.f32.mrb[0].mxu0
      %2221 = vmatprep.mubr.bf16.mxu0 0
      %2222 = vmatmul.mubr.bf16.gmra.mrb[0].mxu0 %v411
      %v2223 = vpop.f32.mrb[0].mxu0
      %v2224 = vadd.f32 %v2079, %v2223
      %v2225 = vpop.f32.mrb[0].mxu0
      %v2226 = vpop.f32.mrb[0].mxu0
      %v2227 = vadd.f32 %v2082, %v2226
      %v2228 = vpop.f32.mrb[0].mxu0
      %2229 = vmatprep.mubr.bf16.mxu0 0
      %2230 = vmatmul.mubr.bf16.gmra.mrb[0].mxu0 %v412
      %v2231 = vpop.f32.mrb[0].mxu0
      %v2232 = vadd.f32 %v2087, %v2231
      %v2233 = vpop.f32.mrb[0].mxu0
      %v2234 = vpop.f32.mrb[0].mxu0
      %v2235 = vadd.f32 %v2090, %v2234
      %v2236 = vpop.f32.mrb[0].mxu0
      %2237 = vmatprep.mubr.bf16.mxu0 0
      %2238 = vmatmul.mubr.bf16.gmra.mrb[0].mxu0 %v413
      %v2239 = vpop.f32.mrb[0].mxu0
      %v2240 = vadd.f32 %v2095, %v2239
      %v2241 = vpop.f32.mrb[0].mxu0
      %v2242 = vpop.f32.mrb[0].mxu0
      %v2243 = vadd.f32 %v2098, %v2242
      %v2244 = vpop.f32.mrb[0].mxu0
      %2245 = vmatprep.mubr.bf16.mxu0 0
      %2246 = vmatmul.mubr.bf16.gmra.mrb[0].mxu0 %v414
      %v2247 = vpop.f32.mrb[0].mxu0
      %v2248 = vadd.f32 %v2103, %v2247
      %v2249 = vpop.f32.mrb[0].mxu0
      %v2250 = vpop.f32.mrb[0].mxu0
      %v2251 = vadd.f32 %v2106, %v2250
      %v2252 = vpop.f32.mrb[0].mxu0
      %2253 = vmatprep.mubr.bf16.mxu0 0
      %2254 = vmatmul.mubr.bf16.gmra.mrb[0].mxu0 %v415
      %v2255 = vpop.f32.mrb[0].mxu0
      %v2256 = vadd.f32 %v2111, %v2255
      %v2257 = vpop.f32.mrb[0].mxu0
      %v2258 = vpop.f32.mrb[0].mxu0
      %v2259 = vadd.f32 %v2114, %v2258
      %v2260 = vpop.f32.mrb[0].mxu0
      %2261 = vdwg.mxu0
      %v2262 = vld [vmem:[%s5 + $0x4] sm:$0x1]
      %v2264 = vlaneseq
      %v2265 = vshrl.u32 %v2264, 7
      %v2266 = vsub.s32 0, %v2265
      %v2267 = vrot.slane %v2262, %v2266
      %v2269 = vadd.f32 %v2200, %v2267
      %v2270 = vadd.f32 %v2203, %v2267
      %v2271 = vadd.f32 %v2208, %v2267
      %v2272 = vadd.f32 %v2211, %v2267
      %v2273 = vadd.f32 %v2216, %v2267
      %v2274 = vadd.f32 %v2219, %v2267
      %v2275 = vadd.f32 %v2224, %v2267
      %v2276 = vadd.f32 %v2227, %v2267
      %v2277 = vadd.f32 %v2232, %v2267
      %v2278 = vadd.f32 %v2235, %v2267
      %v2279 = vadd.f32 %v2240, %v2267
      %v2280 = vadd.f32 %v2243, %v2267
      %v2281 = vadd.f32 %v2248, %v2267
      %v2282 = vadd.f32 %v2251, %v2267
      %v2283 = vadd.f32 %v2256, %v2267
      %v2284 = vadd.f32 %v2259, %v2267
      %vm2285 = vcmp.gt.f32.partialorder %v2269, 0.0
      %vm2286 = vcmp.gt.f32.partialorder %v2270, 0.0
      %vm2287 = vcmp.gt.f32.partialorder %v2271, 0.0
      %vm2288 = vcmp.gt.f32.partialorder %v2272, 0.0
      %vm2289 = vcmp.gt.f32.partialorder %v2273, 0.0
      %vm2290 = vcmp.gt.f32.partialorder %v2274, 0.0
      %vm2291 = vcmp.gt.f32.partialorder %v2275, 0.0
      %vm2292 = vcmp.gt.f32.partialorder %v2276, 0.0
      %vm2293 = vcmp.gt.f32.partialorder %v2277, 0.0
      %vm2294 = vcmp.gt.f32.partialorder %v2278, 0.0
      %vm2295 = vcmp.gt.f32.partialorder %v2279, 0.0
      %vm2296 = vcmp.gt.f32.partialorder %v2280, 0.0
      %vm2297 = vcmp.gt.f32.partialorder %v2281, 0.0
      %vm2298 = vcmp.gt.f32.partialorder %v2282, 0.0
      %vm2299 = vcmp.gt.f32.partialorder %v2283, 0.0
      %vm2300 = vcmp.gt.f32.partialorder %v2284, 0.0
      %v2301 = vmin.f32 %v2269, 0.0
      %v2302 = vmin.f32 %v2270, 0.0
      %v2303 = vmin.f32 %v2271, 0.0
      %v2304 = vmin.f32 %v2272, 0.0
      %v2305 = vmin.f32 %v2273, 0.0
      %v2306 = vmin.f32 %v2274, 0.0
      %v2307 = vmin.f32 %v2275, 0.0
      %v2308 = vmin.f32 %v2276, 0.0
      %v2309 = vmin.f32 %v2277, 0.0
      %v2310 = vmin.f32 %v2278, 0.0
      %v2311 = vmin.f32 %v2279, 0.0
      %v2312 = vmin.f32 %v2280, 0.0
      %v2313 = vmin.f32 %v2281, 0.0
      %v2314 = vmin.f32 %v2282, 0.0
      %v2315 = vmin.f32 %v2283, 0.0
      %v2316 = vmin.f32 %v2284, 0.0
      %v2317 = vmul.f32 %v2301, 1.442695
      %v2318 = vpow.pop %v2317
      %v2319 = vmul.f32 %v2302, 1.442695
      %v2320 = vpow.pop %v2319
      %v2321 = vmul.f32 %v2303, 1.442695
      %v2322 = vpow.pop %v2321
      %v2323 = vmul.f32 %v2304, 1.442695
      %v2324 = vpow.pop %v2323
      %v2325 = vmul.f32 %v2305, 1.442695
      %v2326 = vpow.pop %v2325
      %v2327 = vmul.f32 %v2306, 1.442695
      %v2328 = vpow.pop %v2327
      %v2329 = vmul.f32 %v2307, 1.442695
      %v2330 = vpow.pop %v2329
      %v2331 = vmul.f32 %v2308, 1.442695
      %v2332 = vpow.pop %v2331
      %v2333 = vmul.f32 %v2309, 1.442695
      %v2334 = vpow.pop %v2333
      %v2335 = vmul.f32 %v2310, 1.442695
      %v2336 = vpow.pop %v2335
      %v2337 = vmul.f32 %v2311, 1.442695
      %v2338 = vpow.pop %v2337
      %v2339 = vmul.f32 %v2312, 1.442695
      %v2340 = vpow.pop %v2339
      %v2341 = vmul.f32 %v2313, 1.442695
      %v2342 = vpow.pop %v2341
      %v2343 = vmul.f32 %v2314, 1.442695
      %v2344 = vpow.pop %v2343
      %v2345 = vmul.f32 %v2315, 1.442695
      %v2346 = vpow.pop %v2345
      %v2347 = vmul.f32 %v2316, 1.442695
      %v2348 = vpow.pop %v2347
      %v2349 = vsub.f32 %v2318, 1.0
      %v2350 = vsub.f32 %v2320, 1.0
      %v2351 = vsub.f32 %v2322, 1.0
      %v2352 = vsub.f32 %v2324, 1.0
      %v2353 = vsub.f32 %v2326, 1.0
      %v2354 = vsub.f32 %v2328, 1.0
      %v2355 = vsub.f32 %v2330, 1.0
      %v2356 = vsub.f32 %v2332, 1.0
      %v2357 = vsub.f32 %v2334, 1.0
      %v2358 = vsub.f32 %v2336, 1.0
      %v2359 = vsub.f32 %v2338, 1.0
      %v2360 = vsub.f32 %v2340, 1.0
      %v2361 = vsub.f32 %v2342, 1.0
      %v2362 = vsub.f32 %v2344, 1.0
      %v2363 = vsub.f32 %v2346, 1.0
      %v2364 = vsub.f32 %v2348, 1.0
      %v2365 = vsel %vm2285, %v2269, %v2349
      %v2366 = vsel %vm2286, %v2270, %v2350
      %v2367 = vsel %vm2287, %v2271, %v2351
      %v2368 = vsel %vm2288, %v2272, %v2352
      %v2369 = vsel %vm2289, %v2273, %v2353
      %v2370 = vsel %vm2290, %v2274, %v2354
      %v2371 = vsel %vm2291, %v2275, %v2355
      %v2372 = vsel %vm2292, %v2276, %v2356
      %v2373 = vsel %vm2293, %v2277, %v2357
      %v2374 = vsel %vm2294, %v2278, %v2358
      %v2375 = vsel %vm2295, %v2279, %v2359
      %v2376 = vsel %vm2296, %v2280, %v2360
      %v2377 = vsel %vm2297, %v2281, %v2361
      %v2378 = vsel %vm2298, %v2282, %v2362
      %v2379 = vsel %vm2299, %v2283, %v2363
      %v2380 = vsel %vm2300, %v2284, %v2364
      %v2381 = vld [vmem:[%s6 + $0x4] sm:$0x1]
      %v2383 = vlaneseq
      %v2384 = vshrl.u32 %v2383, 7
      %v2385 = vsub.s32 0, %v2384
      %v2386 = vrot.slane %v2381, %v2385
      %v2388 = vmul.f32 %v2365, %v2386
      %v2389 = vmul.f32 %v2366, %v2386
      %v2390 = vmul.f32 %v2367, %v2386
      %v2391 = vmul.f32 %v2368, %v2386
      %v2392 = vmul.f32 %v2369, %v2386
      %v2393 = vmul.f32 %v2370, %v2386
      %v2394 = vmul.f32 %v2371, %v2386
      %v2395 = vmul.f32 %v2372, %v2386
      %v2396 = vmul.f32 %v2373, %v2386
      %v2397 = vmul.f32 %v2374, %v2386
      %v2398 = vmul.f32 %v2375, %v2386
      %v2399 = vmul.f32 %v2376, %v2386
      %v2400 = vmul.f32 %v2377, %v2386
      %v2401 = vmul.f32 %v2378, %v2386
      %v2402 = vmul.f32 %v2379, %v2386
      %v2403 = vmul.f32 %v2380, %v2386
      %v2404 = vadd.f32 %v1924, %v2388
      %v2405 = vadd.f32 %v1925, %v2389
      %v2406 = vadd.f32 %v1926, %v2390
      %v2407 = vadd.f32 %v1927, %v2391
      %v2408 = vadd.f32 %v1928, %v2392
      %v2409 = vadd.f32 %v1929, %v2393
      %v2410 = vadd.f32 %v1930, %v2394
      %v2411 = vadd.f32 %v1931, %v2395
      %v2412 = vadd.f32 %v1932, %v2396
      %v2413 = vadd.f32 %v1933, %v2397
      %v2414 = vadd.f32 %v1934, %v2398
      %v2415 = vadd.f32 %v1935, %v2399
      %v2416 = vadd.f32 %v1936, %v2400
      %v2417 = vadd.f32 %v1937, %v2401
      %v2418 = vadd.f32 %v1938, %v2402
      %v2419 = vadd.f32 %v1939, %v2403
      %2420 = vst [vmem:[#allocation12] sm:$0xff] %v2404
      %2421 = vst [vmem:[#allocation12 + $0x8] sm:$0xff] %v2405
      %2422 = vst [vmem:[#allocation12 + $0x10] sm:$0xff] %v2406
      %2423 = vst [vmem:[#allocation12 + $0x18] sm:$0xff] %v2407
      %2424 = vst [vmem:[#allocation12 + $0x20] sm:$0xff] %v2408
      %2425 = vst [vmem:[#allocation12 + $0x28] sm:$0xff] %v2409
      %2426 = vst [vmem:[#allocation12 + $0x30] sm:$0xff] %v2410
      %2427 = vst [vmem:[#allocation12 + $0x38] sm:$0xff] %v2411
      %2428 = vst [vmem:[#allocation12 + $0x40] sm:$0xff] %v2412
      %2429 = vst [vmem:[#allocation12 + $0x48] sm:$0xff] %v2413
      %2430 = vst [vmem:[#allocation12 + $0x50] sm:$0xff] %v2414
      %2431 = vst [vmem:[#allocation12 + $0x58] sm:$0xff] %v2415
      %2432 = vst [vmem:[#allocation12 + $0x60] sm:$0xff] %v2416
      %2433 = vst [vmem:[#allocation12 + $0x68] sm:$0xff] %v2417
      %2434 = vst [vmem:[#allocation12 + $0x70] sm:$0xff] %v2418
      %2435 = vst [vmem:[#allocation12 + $0x78] sm:$0xff] %v2419
    $region57: #{tpu_custom_call.1} parent=1 // pred_fallthru
      _
    // Predicated region
    $region58: #{tpu_custom_call.1} parent=1 // pred_check
      _
    $region59: #{tpu_custom_call.1} parent=1 // pred_check_branch
      %2437 = sbr.rel (0) target = $region61
    $region60: #{tpu_custom_call.1} parent=1 // pred_region
      %s2439 = ssub.s32 2048, 2048
      %2440 = vsyncadd [#allocation5], %s2439
      %s2441 = sshll.u32 [#allocation12], 4
      %s2442 = int_to_ptr.vmem [resolvable:$true] %s2441
      %2447 = dma.vmem_to_hbm [thread:$0]  %s2442, 2048, %s7, [#allocation5], 128, 128, 8
    $region61: #{tpu_custom_call.1} parent=1 // pred_fallthru
      _
    // Predicated region
    $region62: #{tpu_custom_call.1} parent=1 // pred_check
      _
    $region63: #{tpu_custom_call.1} parent=1 // pred_check_branch
      %2449 = sbr.rel (0) target = $region65
    $region64: #{tpu_custom_call.1} parent=1 // pred_region
      %2450 = dma.done [#allocation5], 2048
    $region65: #{tpu_custom_call.1} parent=1 // pred_fallthru
      _
    %2451 = vsyncpa [#allocation4], 1
    %2452 = vsyncpa [#allocation7], 1
    %2453 = vsyncpa [#allocation10], 1
    %2454 = vsyncpa [#allocation5], 1

</llo_original>
